<compile_context>
chip_gen: v5e
topology: v5e:2x2
jax: 0.10.0
libtpu: 0.0.40
codegen_flags: <defaults>
</compile_context>

<pallas_src>
import functools
import math

import jax
import jax.numpy as jnp
from jax.experimental import pallas as pl
from jax.experimental.pallas import tpu as pltpu


# --------------------------------------------------------------------------
# shared elementwise math (used inside the kernel and by the pure-JAX ref)
# --------------------------------------------------------------------------
def _layer_norm(x, gamma, beta, eps):
    mu = jnp.mean(x, axis=-1, keepdims=True)
    var = jnp.mean((x - mu) ** 2, axis=-1, keepdims=True)
    return (x - mu) * jax.lax.rsqrt(var + eps) * gamma + beta


def _gelu_exact(x):
    return 0.5 * x * (1.0 + jax.lax.erf(x * 0.7071067811865475))


def _softmax_last(x):
    m = jnp.max(x, axis=-1, keepdims=True)
    e = jnp.exp(x - m)
    return e / jnp.sum(e, axis=-1, keepdims=True)


# --------------------------------------------------------------------------
# in-kernel encoder layer on one (tb, S, D) activation tile
# --------------------------------------------------------------------------
def _encoder_layer_tile(x, adj_t, wqkv_t, bqkv, wo_heads, bo, w1_t, b1,
                        w2_t, b2, g1, be1, g2, be2, *, num_heads, eps):
    """Weights arrive pre-transposed to [in, out]; the 1/sqrt(hd) scale is
    folded into the Q columns of wqkv_t/bqkv; wo_heads is [H, hd, D];
    adj_t[b,s,t] = adj[b,t,s] so graph mixing is a plain batched A @ B."""
    tb, S, D = x.shape
    hd = D // num_heads
    BS = tb * S
    mm_dtype = wqkv_t.dtype          # bf16 MXU inputs (f32 fallback), f32 accum

    # collapse (batch, seq) -> one big-M matmul for the fused QKV projection
    x2 = x.reshape(BS, D)
    qkv = jnp.dot(x2.astype(mm_dtype), wqkv_t,
                  preferred_element_type=jnp.float32) + bqkv      # (BS, 3D) f32
    q = qkv[:, :D].reshape(tb, S, D).astype(mm_dtype)             # pre-scaled
    k = qkv[:, D:2 * D].reshape(tb, S, D).astype(mm_dtype)
    v = qkv[:, 2 * D:].reshape(tb, S, D).astype(mm_dtype)

    # multi-head attention; each head's context is folded straight into the
    # output projection (no concatenate, no H live per-head output copies)
    attn_w = jnp.zeros((tb, S, S), jnp.float32)
    ctx_proj = jnp.zeros((BS, D), jnp.float32)
    for h in range(num_heads):                       # static, fully unrolled
        sl = slice(h * hd, (h + 1) * hd)
        s = jnp.einsum('bqd,bkd->bqk', q[:, :, sl], k[:, :, sl],
                       preferred_element_type=jnp.float32)        # (tb,S,S)
        m = jnp.max(s, axis=-1, keepdims=True)
        e = jnp.exp(s - m)                                        # EUP
        p = e * pl.reciprocal(jnp.sum(e, axis=-1, keepdims=True), approx=True)
        attn_w = attn_w + p
        ctx = jnp.einsum('bqk,bkd->bqd', p.astype(mm_dtype), v[:, :, sl],
                         preferred_element_type=jnp.float32)      # (tb,S,hd)
        ctx_proj = ctx_proj + jnp.dot(
            ctx.reshape(BS, hd).astype(mm_dtype), wo_heads[h],
            preferred_element_type=jnp.float32)                   # (BS, D)
    attn_w = attn_w * (1.0 / num_heads)                           # head average

    attn_out = (ctx_proj + bo).reshape(tb, S, D)                  # f32

    # src2 = matmul(attn_out.transpose(1,2), adj).transpose(1,2) == adj^T @ attn_out
    src2 = jnp.einsum('bst,btd->bsd', adj_t, attn_out.astype(mm_dtype),
                      preferred_element_type=jnp.float32)

    x1 = _layer_norm((x + src2).reshape(BS, D), g1, be1, eps)     # f32

    h1 = jnp.dot(x1.astype(mm_dtype), w1_t,
                 preferred_element_type=jnp.float32) + b1
    h1 = _gelu_exact(h1)                                          # exact erf GELU
    h2 = jnp.dot(h1.astype(mm_dtype), w2_t,
                 preferred_element_type=jnp.float32) + b2

    out = _layer_norm(x1 + h2, g2, be2, eps)
    return out.reshape(tb, S, D), attn_w


# --------------------------------------------------------------------------
# fused kernel: all layers + classifier epilogue for one batch tile
# --------------------------------------------------------------------------
def _fused_model_kernel(src_ref, adj_ref,
                        wqkv_ref, bqkv_ref, wo_ref, bo_ref,
                        w1_ref, b1_ref, w2_ref, b2_ref,
                        g1_ref, be1_ref, g2_ref, be2_ref,
                        wc_ref, bc_ref,
                        attn_ref, y_ref,
                        h_ref,
                        *, num_heads, num_layers, eps):
    layer = pl.program_id(1)

    # layer 0: load the input tile into the resident VMEM activation scratch
    @pl.when(layer == 0)
    def _init():
        h_ref[...] = src_ref[...]

    out, attn_w = _encoder_layer_tile(
        h_ref[...], adj_ref[...],
        wqkv_ref[...], bqkv_ref[...], wo_ref[...], bo_ref[...],
        w1_ref[...], b1_ref[...], w2_ref[...], b2_ref[...],
        g1_ref[...], be1_ref[...], g2_ref[...], be2_ref[...],
        num_heads=num_heads, eps=eps)

    h_ref[...] = out                  # activations stay resident across layers
    attn_ref[...] = attn_w            # per-layer head-averaged attention

    # epilogue on the last layer: fused mean-pool + classifier matmul
    # (re-uses the in-register `out`, no extra VMEM reload of h)
    @pl.when(layer == num_layers - 1)
    def _classify():
        pooled = jnp.mean(out, axis=1)                            # (tb, D) f32
        y_ref[...] = (jnp.dot(pooled.astype(wc_ref.dtype), wc_ref[...],
                              preferred_element_type=jnp.float32)
                      + bc_ref[...])


# --------------------------------------------------------------------------
# host-side parameter preparation (transpose to [in,out], fold scale, cast)
# --------------------------------------------------------------------------
def _prepare_params(layer_params, cls_params, *, num_heads, matmul_dtype):
    (wqkv, bqkv, wo, bo, w1, b1, w2, b2, g1, be1, g2, be2) = layer_params
    wc, bc = cls_params
    D = wo.shape[0]
    hd = D // num_heads
    scale = 1.0 / math.sqrt(hd)
    # fold the attention scale into the Q columns of the fused QKV projection
    scale_vec = jnp.concatenate([jnp.full((D,), scale, jnp.float32),
                                 jnp.ones((2 * D,), jnp.float32)])
    wqkv_t = (wqkv.T * scale_vec[None, :]).astype(matmul_dtype)    # (D, 3D)
    bqkv_s = (bqkv * scale_vec[None, :]).astype(jnp.float32)       # (1, 3D)
    wo_heads = wo.T.reshape(num_heads, hd, D).astype(matmul_dtype)  # (H, hd, D)
    return (wqkv_t, bqkv_s,
            wo_heads, bo.astype(jnp.float32),
            w1.T.astype(matmul_dtype), b1.astype(jnp.float32),
            w2.T.astype(matmul_dtype), b2.astype(jnp.float32),
            g1.astype(jnp.float32), be1.astype(jnp.float32),
            g2.astype(jnp.float32), be2.astype(jnp.float32),
            wc.T.astype(matmul_dtype), bc.astype(jnp.float32))


# --------------------------------------------------------------------------
# wrapper: one pallas_call for the whole forward pass
# --------------------------------------------------------------------------
def model_forward(x, adjacency, layer_params, cls_params, *,
                  num_layers, num_heads, block_b=None,
                  matmul_dtype=jnp.bfloat16, eps=1e-5):
    B, S, D = x.shape
    assert D % num_heads == 0, "d_model must be divisible by nhead"
    C = cls_params[0].shape[0]
    if block_b is None:
        block_b = B if B <= 8 else 8
    assert B % block_b == 0, "batch must be divisible by block_b"
    tb = block_b
    nb = B // tb

    params = _prepare_params(layer_params, cls_params,
                             num_heads=num_heads, matmul_dtype=matmul_dtype)
    # pre-transpose adjacency so the graph mixing is a plain batched matmul
    adj_t = jnp.swapaxes(adjacency, 1, 2).astype(matmul_dtype)

    def per_batch_block(shape):
        nzeros = len(shape) - 1
        return pl.BlockSpec((tb,) + tuple(shape[1:]),
                            lambda b, l: (b,) + (0,) * nzeros)

    def resident_block(shape):
        zeros = (0,) * len(shape)
        return pl.BlockSpec(tuple(shape), lambda b, l: zeros)

    in_specs = ([per_batch_block(x.shape), per_batch_block(adj_t.shape)]
                + [resident_block(p.shape) for p in params])

    out_specs = (
        # per-layer head-averaged attention, written every grid step
        pl.BlockSpec((None, tb, S, S), lambda b, l: (l, b, 0, 0)),
        # classifier logits, written once per batch tile (last-layer epilogue)
        pl.BlockSpec((None, tb, C), lambda b, l: (b, 0, 0)),
    )
    out_shape = (jax.ShapeDtypeStruct((num_layers, B, S, S), jnp.float32),
                 jax.ShapeDtypeStruct((nb, tb, C), jnp.float32))

    kernel = functools.partial(_fused_model_kernel, num_heads=num_heads,
                               num_layers=num_layers, eps=eps)

    attn, y = pl.pallas_call(
        kernel,
        grid=(nb, num_layers),          # batch tiles (parallel) x layers (seq.)
        in_specs=in_specs,
        out_specs=out_specs,
        out_shape=out_shape,
        scratch_shapes=[pltpu.VMEM((tb, S, D), jnp.float32)],  # resident h
        compiler_params=pltpu.CompilerParams(
            dimension_semantics=("parallel", "arbitrary"),
            vmem_limit_bytes=48 * 1024 * 1024),   # fits v7x 64 MiB VMEM too
    )(x, adj_t, *params)

    y = y.reshape(B, C)
    scores = [attn[i] for i in range(num_layers)]
    return y, scores


# --------------------------------------------------------------------------
# pure-JAX f32 reference (mirrors PyTorch semantics; used for validation)
# --------------------------------------------------------------------------
def _encoder_layer_ref(src, adj, wqkv, bqkv, wo, bo, w1, b1, w2, b2,
                       g1, be1, g2, be2, *, num_heads, eps):
    B, S, D = src.shape
    hd = D // num_heads
    scale = 1.0 / math.sqrt(hd)

    qkv = jnp.einsum('bsd,ed->bse', src, wqkv,
                     preferred_element_type=jnp.float32) + bqkv
    q = qkv[:, :, :D] * scale
    k = qkv[:, :, D:2 * D]
    v = qkv[:, :, 2 * D:]

    attn_sum = jnp.zeros((B, S, S), jnp.float32)
    head_outs = []
    for h in range(num_heads):
        qh = q[:, :, h * hd:(h + 1) * hd]
        kh = k[:, :, h * hd:(h + 1) * hd]
        vh = v[:, :, h * hd:(h + 1) * hd]
        s = jnp.einsum('bqd,bkd->bqk', qh, kh,
                       preferred_element_type=jnp.float32)
        p = _softmax_last(s)
        attn_sum = attn_sum + p
        head_outs.append(jnp.einsum('bqk,bkd->bqd', p, vh,
                                    preferred_element_type=jnp.float32))
    attn_weights = attn_sum / num_heads
    attn_out = jnp.concatenate(head_outs, axis=-1)
    attn_out = jnp.einsum('bsd,ed->bse', attn_out, wo,
                          preferred_element_type=jnp.float32) + bo

    src2 = jnp.einsum('btd,bts->bsd', attn_out, adj,
                      preferred_element_type=jnp.float32)
    x = _layer_norm(src + src2, g1, be1, eps)
    h1 = _gelu_exact(jnp.einsum('bsd,ed->bse', x, w1,
                                preferred_element_type=jnp.float32) + b1)
    h2 = jnp.einsum('bsd,ed->bse', h1, w2,
                    preferred_element_type=jnp.float32) + b2
    out = _layer_norm(x + h2, g2, be2, eps)
    return out, attn_weights


def model_forward_ref(x, adj, layer_params, cls_params, *, num_layers, num_heads):
    scores = []
    h = x
    for _ in range(num_layers):
        h, score = _encoder_layer_ref(h, adj, *layer_params,
                                      num_heads=num_heads, eps=1e-5)
        scores.append(score)
    wc, bc = cls_params
    pooled = jnp.mean(h, axis=1)
    y = jnp.dot(pooled, wc.T, preferred_element_type=jnp.float32) + bc
    return y, scores


# --------------------------------------------------------------------------
# deterministic synthetic parameters (shapes follow the module __init__;
# dim_feedforward == d_model as in the PyTorch TransformerEncoder)
# --------------------------------------------------------------------------
def init_params(key, d_model, nclass):
    ks = jax.random.split(key, 5)

    def xavier(k, shape):
        fan_out, fan_in = shape
        limit = math.sqrt(6.0 / (fan_in + fan_out))
        return jax.random.uniform(k, shape, jnp.float32, -limit, limit)

    wqkv = xavier(ks[0], (3 * d_model, d_model))
    bqkv = jnp.zeros((1, 3 * d_model), jnp.float32)
    wo = xavier(ks[1], (d_model, d_model))
    bo = jnp.zeros((1, d_model), jnp.float32)
    w1 = xavier(ks[2], (d_model, d_model))
    b1 = jnp.zeros((1, d_model), jnp.float32)
    w2 = xavier(ks[3], (d_model, d_model))
    b2 = jnp.zeros((1, d_model), jnp.float32)
    g1 = jnp.ones((1, d_model), jnp.float32)
    be1 = jnp.zeros((1, d_model), jnp.float32)
    g2 = jnp.ones((1, d_model), jnp.float32)
    be2 = jnp.zeros((1, d_model), jnp.float32)
    layer_params = (wqkv, bqkv, wo, bo, w1, b1, w2, b2, g1, be1, g2, be2)

    wc = xavier(ks[4], (nclass, d_model))
    bc = jnp.zeros((1, nclass), jnp.float32)
    return layer_params, (wc, bc)


# --------------------------------------------------------------------------
if __name__ == "__main__":
    B, S, D_MODEL, NHEAD, NUM_LAYERS, NCLASS = 2, 8, 32, 4, 2, 8

    key = jax.random.PRNGKey(0)
    kx, kadj, kp = jax.random.split(key, 3)

    x = jax.random.normal(kx, (B, S, D_MODEL), jnp.float32)
    adj_raw = jax.random.uniform(kadj, (B, S, S), jnp.float32)
    adjacency = adj_raw / jnp.sum(adj_raw, axis=-1, keepdims=True)

    layer_params, cls_params = init_params(kp, D_MODEL, NCLASS)

    # production config: bf16 MXU inputs, f32 accumulation, batch-tiled grid
    y, att = model_forward(x, adjacency, layer_params, cls_params,
                           num_layers=NUM_LAYERS, num_heads=NHEAD,
                           block_b=1, matmul_dtype=jnp.bfloat16)
    y = jax.block_until_ready(y)
    att = [jax.block_until_ready(a) for a in att]

    # pure-JAX f32 reference of the PyTorch semantics
    y_ref, att_ref = model_forward_ref(x, adjacency, layer_params, cls_params,
                                       num_layers=NUM_LAYERS, num_heads=NHEAD)

    assert y.shape == (B, NCLASS)
    assert all(a.shape == (B, S, S) for a in att)

    # tight structural check of the same kernel with f32 matmul inputs
    y32, att32 = model_forward(x, adjacency, layer_params, cls_params,
                               num_layers=NUM_LAYERS, num_heads=NHEAD,
                               block_b=1, matmul_dtype=jnp.float32)
    y32 = jax.block_until_ready(y32)
    assert jnp.allclose(y32, y_ref, atol=1e-2, rtol=1e-2)
    for a, ar in zip(att32, att_ref):
        assert jnp.allclose(a, ar, atol=1e-2, rtol=1e-2)

    # looser check for the bf16-input fast path
    assert jnp.allclose(y, y_ref, atol=5e-2, rtol=5e-2)
    for a, ar in zip(att, att_ref):
        assert jnp.allclose(a, ar, atol=2e-2, rtol=2e-2)

    print("KERNEL_OK")
</pallas_src>

<mosaic_0001>
module attributes {stable_mosaic.version = 11 : i64} {
  func.func @_fused_model_kernel(%arg0: i32, %arg1: i32, %arg2: memref<1x8x32xf32, #tpu.memory_space<vmem>>, %arg3: memref<1x8x8xbf16, #tpu.memory_space<vmem>>, %arg4: memref<32x96xbf16, #tpu.memory_space<vmem>>, %arg5: memref<1x96xf32, #tpu.memory_space<vmem>>, %arg6: memref<4x8x32xbf16, #tpu.memory_space<vmem>>, %arg7: memref<1x32xf32, #tpu.memory_space<vmem>>, %arg8: memref<32x32xbf16, #tpu.memory_space<vmem>>, %arg9: memref<1x32xf32, #tpu.memory_space<vmem>>, %arg10: memref<32x32xbf16, #tpu.memory_space<vmem>>, %arg11: memref<1x32xf32, #tpu.memory_space<vmem>>, %arg12: memref<1x32xf32, #tpu.memory_space<vmem>>, %arg13: memref<1x32xf32, #tpu.memory_space<vmem>>, %arg14: memref<1x32xf32, #tpu.memory_space<vmem>>, %arg15: memref<1x32xf32, #tpu.memory_space<vmem>>, %arg16: memref<32x8xbf16, #tpu.memory_space<vmem>>, %arg17: memref<1x8xf32, #tpu.memory_space<vmem>>, %arg18: memref<1x1x8x8xf32, #tpu.memory_space<vmem>>, %arg19: memref<1x1x8xf32, #tpu.memory_space<vmem>>, %arg20: memref<1x8x32xf32, #tpu.memory_space<vmem>>) attributes {dimension_semantics = [#tpu.dimension_semantics<parallel>, #tpu.dimension_semantics<arbitrary>], iteration_bounds = array<i64: 2, 2>, scalar_prefetch = 0 : i64, scratch_operands = 1 : i64, tpu.core_type = #tpu.core_type<tc>, window_params = [{transform_indices = @transform_0, window_bounds = array<i64: 1, 8, 32>}, {transform_indices = @transform_1, window_bounds = array<i64: 1, 8, 8>}, {pipeline_mode = #tpu.pipeline_mode<synchronous>, transform_indices = @transform_2, window_bounds = array<i64: 32, 96>}, {pipeline_mode = #tpu.pipeline_mode<synchronous>, transform_indices = @transform_3, window_bounds = array<i64: 1, 96>}, {pipeline_mode = #tpu.pipeline_mode<synchronous>, transform_indices = @transform_4, window_bounds = array<i64: 4, 8, 32>}, {pipeline_mode = #tpu.pipeline_mode<synchronous>, transform_indices = @transform_5, window_bounds = array<i64: 1, 32>}, {pipeline_mode = #tpu.pipeline_mode<synchronous>, transform_indices = @transform_6, window_bounds = array<i64: 32, 32>}, {pipeline_mode = #tpu.pipeline_mode<synchronous>, transform_indices = @transform_7, window_bounds = array<i64: 1, 32>}, {pipeline_mode = #tpu.pipeline_mode<synchronous>, transform_indices = @transform_8, window_bounds = array<i64: 32, 32>}, {pipeline_mode = #tpu.pipeline_mode<synchronous>, transform_indices = @transform_9, window_bounds = array<i64: 1, 32>}, {pipeline_mode = #tpu.pipeline_mode<synchronous>, transform_indices = @transform_10, window_bounds = array<i64: 1, 32>}, {pipeline_mode = #tpu.pipeline_mode<synchronous>, transform_indices = @transform_11, window_bounds = array<i64: 1, 32>}, {pipeline_mode = #tpu.pipeline_mode<synchronous>, transform_indices = @transform_12, window_bounds = array<i64: 1, 32>}, {pipeline_mode = #tpu.pipeline_mode<synchronous>, transform_indices = @transform_13, window_bounds = array<i64: 1, 32>}, {pipeline_mode = #tpu.pipeline_mode<synchronous>, transform_indices = @transform_14, window_bounds = array<i64: 32, 8>}, {pipeline_mode = #tpu.pipeline_mode<synchronous>, transform_indices = @transform_15, window_bounds = array<i64: 1, 8>}, {transform_indices = @transform_16, window_bounds = array<i64: 1, 1, 8, 8>}, {transform_indices = @transform_17, window_bounds = array<i64: 1, 1, 8>}]} {
    %c0_i32 = arith.constant 0 : i32
    %0 = arith.cmpi eq, %arg1, %c0_i32 : i32
    %1 = arith.extui %0 : i1 to i32
    %c0_i32_0 = arith.constant 0 : i32
    %2 = arith.cmpi ne, %1, %c0_i32_0 : i32
    scf.if %2 {
      %c0_78 = arith.constant 0 : index
      %c0_79 = arith.constant 0 : index
      %c0_80 = arith.constant 0 : index
      %203 = vector.load %arg2[%c0_78, %c0_79, %c0_80] : memref<1x8x32xf32, #tpu.memory_space<vmem>>, vector<1x8x32xf32>
      %c0_81 = arith.constant 0 : index
      %c0_82 = arith.constant 0 : index
      %c0_83 = arith.constant 0 : index
      %204 = vector.load %arg20[%c0_81, %c0_82, %c0_83] : memref<1x8x32xf32, #tpu.memory_space<vmem>>, vector<1x8x32xf32>
      tpu.vector_store %arg20[%c0_81, %c0_82, %c0_83], %203 {strides = array<i32>} : memref<1x8x32xf32, #tpu.memory_space<vmem>>, vector<1x8x32xf32>,
    } else {
    }
    %c0 = arith.constant 0 : index
    %c0_1 = arith.constant 0 : index
    %c0_2 = arith.constant 0 : index
    %3 = vector.load %arg20[%c0, %c0_1, %c0_2] : memref<1x8x32xf32, #tpu.memory_space<vmem>>, vector<1x8x32xf32>
    %c0_3 = arith.constant 0 : index
    %c0_4 = arith.constant 0 : index
    %c0_5 = arith.constant 0 : index
    %4 = vector.load %arg3[%c0_3, %c0_4, %c0_5] : memref<1x8x8xbf16, #tpu.memory_space<vmem>>, vector<1x8x8xbf16>
    %c0_6 = arith.constant 0 : index
    %c0_7 = arith.constant 0 : index
    %5 = vector.load %arg4[%c0_6, %c0_7] : memref<32x96xbf16, #tpu.memory_space<vmem>>, vector<32x96xbf16>
    %c0_8 = arith.constant 0 : index
    %c0_9 = arith.constant 0 : index
    %6 = vector.load %arg5[%c0_8, %c0_9] : memref<1x96xf32, #tpu.memory_space<vmem>>, vector<1x96xf32>
    %c0_10 = arith.constant 0 : index
    %c0_11 = arith.constant 0 : index
    %c0_12 = arith.constant 0 : index
    %7 = vector.load %arg6[%c0_10, %c0_11, %c0_12] : memref<4x8x32xbf16, #tpu.memory_space<vmem>>, vector<4x8x32xbf16>
    %c0_13 = arith.constant 0 : index
    %c0_14 = arith.constant 0 : index
    %8 = vector.load %arg7[%c0_13, %c0_14] : memref<1x32xf32, #tpu.memory_space<vmem>>, vector<1x32xf32>
    %c0_15 = arith.constant 0 : index
    %c0_16 = arith.constant 0 : index
    %9 = vector.load %arg8[%c0_15, %c0_16] : memref<32x32xbf16, #tpu.memory_space<vmem>>, vector<32x32xbf16>
    %c0_17 = arith.constant 0 : index
    %c0_18 = arith.constant 0 : index
    %10 = vector.load %arg9[%c0_17, %c0_18] : memref<1x32xf32, #tpu.memory_space<vmem>>, vector<1x32xf32>
    %c0_19 = arith.constant 0 : index
    %c0_20 = arith.constant 0 : index
    %11 = vector.load %arg10[%c0_19, %c0_20] : memref<32x32xbf16, #tpu.memory_space<vmem>>, vector<32x32xbf16>
    %c0_21 = arith.constant 0 : index
    %c0_22 = arith.constant 0 : index
    %12 = vector.load %arg11[%c0_21, %c0_22] : memref<1x32xf32, #tpu.memory_space<vmem>>, vector<1x32xf32>
    %c0_23 = arith.constant 0 : index
    %c0_24 = arith.constant 0 : index
    %13 = vector.load %arg12[%c0_23, %c0_24] : memref<1x32xf32, #tpu.memory_space<vmem>>, vector<1x32xf32>
    %c0_25 = arith.constant 0 : index
    %c0_26 = arith.constant 0 : index
    %14 = vector.load %arg13[%c0_25, %c0_26] : memref<1x32xf32, #tpu.memory_space<vmem>>, vector<1x32xf32>
    %c0_27 = arith.constant 0 : index
    %c0_28 = arith.constant 0 : index
    %15 = vector.load %arg14[%c0_27, %c0_28] : memref<1x32xf32, #tpu.memory_space<vmem>>, vector<1x32xf32>
    %c0_29 = arith.constant 0 : index
    %c0_30 = arith.constant 0 : index
    %16 = vector.load %arg15[%c0_29, %c0_30] : memref<1x32xf32, #tpu.memory_space<vmem>>, vector<1x32xf32>
    %17 = vector.shape_cast %3 : vector<1x8x32xf32> to vector<8x32xf32>
    %18 = arith.truncf %17 : vector<8x32xf32> to vector<8x32xbf16>
    %cst = arith.constant dense<0.000000e+00> : vector<8x96xf32>
    %19 = tpu.matmul %18, %5, %cst {dimension_numbers = #tpu.dot_dimension_numbers<[1], [0], [0], [1], [0, 0, 1, 1], [], []>} : vector<8x32xbf16>, vector<32x96xbf16>, vector<8x96xf32> -> vector<8x96xf32>
    %20 = vector.broadcast %6 : vector<1x96xf32> to vector<8x96xf32>
    %21 = arith.addf %19, %20 : vector<8x96xf32>
    %22 = vector.extract_strided_slice %21 {offsets = [0, 0], sizes = [8, 32], strides = [1, 1]} : vector<8x96xf32> to vector<8x32xf32>
    %23 = vector.shape_cast %22 : vector<8x32xf32> to vector<1x8x32xf32>
    %24 = arith.truncf %23 : vector<1x8x32xf32> to vector<1x8x32xbf16>
    %25 = vector.extract_strided_slice %21 {offsets = [0, 32], sizes = [8, 32], strides = [1, 1]} : vector<8x96xf32> to vector<8x32xf32>
    %26 = vector.shape_cast %25 : vector<8x32xf32> to vector<1x8x32xf32>
    %27 = arith.truncf %26 : vector<1x8x32xf32> to vector<1x8x32xbf16>
    %28 = vector.extract_strided_slice %21 {offsets = [0, 64], sizes = [8, 32], strides = [1, 1]} : vector<8x96xf32> to vector<8x32xf32>
    %29 = vector.shape_cast %28 : vector<8x32xf32> to vector<1x8x32xf32>
    %30 = arith.truncf %29 : vector<1x8x32xf32> to vector<1x8x32xbf16>
    %cst_31 = arith.constant 0.000000e+00 : f32
    %31 = vector.broadcast %cst_31 : f32 to vector<1x8x8xf32>
    %cst_32 = arith.constant 0.000000e+00 : f32
    %32 = vector.broadcast %cst_32 : f32 to vector<8x32xf32>
    %33 = vector.extract_strided_slice %24 {offsets = [0, 0, 0], sizes = [1, 8, 8], strides = [1, 1, 1]} : vector<1x8x32xbf16> to vector<1x8x8xbf16>
    %34 = vector.extract_strided_slice %27 {offsets = [0, 0, 0], sizes = [1, 8, 8], strides = [1, 1, 1]} : vector<1x8x32xbf16> to vector<1x8x8xbf16>
    "tpu.trace_start"() <{level = 10 : i32, message = "bqd,bkd->bqk"}> : () -> ()
    %cst_33 = arith.constant dense<0.000000e+00> : vector<1x8x8xf32>
    %35 = tpu.matmul %33, %34, %cst_33 {dimension_numbers = #tpu.dot_dimension_numbers<[2], [2], [1], [1], [0, 0, 0, 1, 1, 1], [0], [0]>} : vector<1x8x8xbf16>, vector<1x8x8xbf16>, vector<1x8x8xf32> -> vector<1x8x8xf32>
    "tpu.trace_stop"() : () -> ()
    %cst_34 = arith.constant dense<0xFF800000> : vector<1x8xf32>
    %36 = vector.multi_reduction <maximumf>, %35, %cst_34 [2] : vector<1x8x8xf32> to vector<1x8xf32>
    %37 = vector.shape_cast %36 : vector<1x8xf32> to vector<1x8x1xf32>
    %38 = vector.broadcast %37 : vector<1x8x1xf32> to vector<1x8x8xf32>
    %39 = arith.subf %35, %38 : vector<1x8x8xf32>
    %40 = math.exp %39 : vector<1x8x8xf32>
    %cst_35 = arith.constant dense<0.000000e+00> : vector<1x8xf32>
    %41 = vector.multi_reduction <add>, %40, %cst_35 [2] : vector<1x8x8xf32> to vector<1x8xf32>
    %42 = vector.shape_cast %41 : vector<1x8xf32> to vector<1x8x1xf32>
    %43 = tpu.reciprocal %42 {approx = true} : vector<1x8x1xf32> -> vector<1x8x1xf32>
    %44 = vector.broadcast %43 : vector<1x8x1xf32> to vector<1x8x8xf32>
    %45 = arith.mulf %40, %44 : vector<1x8x8xf32>
    %46 = arith.addf %31, %45 : vector<1x8x8xf32>
    %47 = arith.truncf %45 : vector<1x8x8xf32> to vector<1x8x8xbf16>
    %48 = vector.extract_strided_slice %30 {offsets = [0, 0, 0], sizes = [1, 8, 8], strides = [1, 1, 1]} : vector<1x8x32xbf16> to vector<1x8x8xbf16>
    "tpu.trace_start"() <{level = 10 : i32, message = "bqk,bkd->bqd"}> : () -> ()
    %cst_36 = arith.constant dense<0.000000e+00> : vector<1x8x8xf32>
    %49 = tpu.matmul %47, %48, %cst_36 {dimension_numbers = #tpu.dot_dimension_numbers<[2], [1], [1], [2], [0, 0, 0, 1, 1, 2], [0], [0]>} : vector<1x8x8xbf16>, vector<1x8x8xbf16>, vector<1x8x8xf32> -> vector<1x8x8xf32>
    "tpu.trace_stop"() : () -> ()
    %50 = vector.shape_cast %49 : vector<1x8x8xf32> to vector<8x8xf32>
    %51 = arith.truncf %50 : vector<8x8xf32> to vector<8x8xbf16>
    %52 = vector.extract_strided_slice %7 {offsets = [0, 0, 0], sizes = [1, 8, 32], strides = [1, 1, 1]} : vector<4x8x32xbf16> to vector<1x8x32xbf16>
    %53 = vector.shape_cast %52 : vector<1x8x32xbf16> to vector<8x32xbf16>
    %cst_37 = arith.constant dense<0.000000e+00> : vector<8x32xf32>
    %54 = tpu.matmul %51, %53, %cst_37 {dimension_numbers = #tpu.dot_dimension_numbers<[1], [0], [0], [1], [0, 0, 1, 1], [], []>} : vector<8x8xbf16>, vector<8x32xbf16>, vector<8x32xf32> -> vector<8x32xf32>
    %55 = arith.addf %32, %54 : vector<8x32xf32>
    %56 = vector.extract_strided_slice %24 {offsets = [0, 0, 8], sizes = [1, 8, 8], strides = [1, 1, 1]} : vector<1x8x32xbf16> to vector<1x8x8xbf16>
    %57 = vector.extract_strided_slice %27 {offsets = [0, 0, 8], sizes = [1, 8, 8], strides = [1, 1, 1]} : vector<1x8x32xbf16> to vector<1x8x8xbf16>
    "tpu.trace_start"() <{level = 10 : i32, message = "bqd,bkd->bqk"}> : () -> ()
    %cst_38 = arith.constant dense<0.000000e+00> : vector<1x8x8xf32>
    %58 = tpu.matmul %56, %57, %cst_38 {dimension_numbers = #tpu.dot_dimension_numbers<[2], [2], [1], [1], [0, 0, 0, 1, 1, 1], [0], [0]>} : vector<1x8x8xbf16>, vector<1x8x8xbf16>, vector<1x8x8xf32> -> vector<1x8x8xf32>
    "tpu.trace_stop"() : () -> ()
    %cst_39 = arith.constant dense<0xFF800000> : vector<1x8xf32>
    %59 = vector.multi_reduction <maximumf>, %58, %cst_39 [2] : vector<1x8x8xf32> to vector<1x8xf32>
    %60 = vector.shape_cast %59 : vector<1x8xf32> to vector<1x8x1xf32>
    %61 = vector.broadcast %60 : vector<1x8x1xf32> to vector<1x8x8xf32>
    %62 = arith.subf %58, %61 : vector<1x8x8xf32>
    %63 = math.exp %62 : vector<1x8x8xf32>
    %cst_40 = arith.constant dense<0.000000e+00> : vector<1x8xf32>
    %64 = vector.multi_reduction <add>, %63, %cst_40 [2] : vector<1x8x8xf32> to vector<1x8xf32>
    %65 = vector.shape_cast %64 : vector<1x8xf32> to vector<1x8x1xf32>
    %66 = tpu.reciprocal %65 {approx = true} : vector<1x8x1xf32> -> vector<1x8x1xf32>
    %67 = vector.broadcast %66 : vector<1x8x1xf32> to vector<1x8x8xf32>
    %68 = arith.mulf %63, %67 : vector<1x8x8xf32>
    %69 = arith.addf %46, %68 : vector<1x8x8xf32>
    %70 = arith.truncf %68 : vector<1x8x8xf32> to vector<1x8x8xbf16>
    %71 = vector.extract_strided_slice %30 {offsets = [0, 0, 8], sizes = [1, 8, 8], strides = [1, 1, 1]} : vector<1x8x32xbf16> to vector<1x8x8xbf16>
    "tpu.trace_start"() <{level = 10 : i32, message = "bqk,bkd->bqd"}> : () -> ()
    %cst_41 = arith.constant dense<0.000000e+00> : vector<1x8x8xf32>
    %72 = tpu.matmul %70, %71, %cst_41 {dimension_numbers = #tpu.dot_dimension_numbers<[2], [1], [1], [2], [0, 0, 0, 1, 1, 2], [0], [0]>} : vector<1x8x8xbf16>, vector<1x8x8xbf16>, vector<1x8x8xf32> -> vector<1x8x8xf32>
    "tpu.trace_stop"() : () -> ()
    %73 = vector.shape_cast %72 : vector<1x8x8xf32> to vector<8x8xf32>
    %74 = arith.truncf %73 : vector<8x8xf32> to vector<8x8xbf16>
    %75 = vector.extract_strided_slice %7 {offsets = [1, 0, 0], sizes = [1, 8, 32], strides = [1, 1, 1]} : vector<4x8x32xbf16> to vector<1x8x32xbf16>
    %76 = vector.shape_cast %75 : vector<1x8x32xbf16> to vector<8x32xbf16>
    %cst_42 = arith.constant dense<0.000000e+00> : vector<8x32xf32>
    %77 = tpu.matmul %74, %76, %cst_42 {dimension_numbers = #tpu.dot_dimension_numbers<[1], [0], [0], [1], [0, 0, 1, 1], [], []>} : vector<8x8xbf16>, vector<8x32xbf16>, vector<8x32xf32> -> vector<8x32xf32>
    %78 = arith.addf %55, %77 : vector<8x32xf32>
    %79 = vector.extract_strided_slice %24 {offsets = [0, 0, 16], sizes = [1, 8, 8], strides = [1, 1, 1]} : vector<1x8x32xbf16> to vector<1x8x8xbf16>
    %80 = vector.extract_strided_slice %27 {offsets = [0, 0, 16], sizes = [1, 8, 8], strides = [1, 1, 1]} : vector<1x8x32xbf16> to vector<1x8x8xbf16>
    "tpu.trace_start"() <{level = 10 : i32, message = "bqd,bkd->bqk"}> : () -> ()
    %cst_43 = arith.constant dense<0.000000e+00> : vector<1x8x8xf32>
    %81 = tpu.matmul %79, %80, %cst_43 {dimension_numbers = #tpu.dot_dimension_numbers<[2], [2], [1], [1], [0, 0, 0, 1, 1, 1], [0], [0]>} : vector<1x8x8xbf16>, vector<1x8x8xbf16>, vector<1x8x8xf32> -> vector<1x8x8xf32>
    "tpu.trace_stop"() : () -> ()
    %cst_44 = arith.constant dense<0xFF800000> : vector<1x8xf32>
    %82 = vector.multi_reduction <maximumf>, %81, %cst_44 [2] : vector<1x8x8xf32> to vector<1x8xf32>
    %83 = vector.shape_cast %82 : vector<1x8xf32> to vector<1x8x1xf32>
    %84 = vector.broadcast %83 : vector<1x8x1xf32> to vector<1x8x8xf32>
    %85 = arith.subf %81, %84 : vector<1x8x8xf32>
    %86 = math.exp %85 : vector<1x8x8xf32>
    %cst_45 = arith.constant dense<0.000000e+00> : vector<1x8xf32>
    %87 = vector.multi_reduction <add>, %86, %cst_45 [2] : vector<1x8x8xf32> to vector<1x8xf32>
    %88 = vector.shape_cast %87 : vector<1x8xf32> to vector<1x8x1xf32>
    %89 = tpu.reciprocal %88 {approx = true} : vector<1x8x1xf32> -> vector<1x8x1xf32>
    %90 = vector.broadcast %89 : vector<1x8x1xf32> to vector<1x8x8xf32>
    %91 = arith.mulf %86, %90 : vector<1x8x8xf32>
    %92 = arith.addf %69, %91 : vector<1x8x8xf32>
    %93 = arith.truncf %91 : vector<1x8x8xf32> to vector<1x8x8xbf16>
    %94 = vector.extract_strided_slice %30 {offsets = [0, 0, 16], sizes = [1, 8, 8], strides = [1, 1, 1]} : vector<1x8x32xbf16> to vector<1x8x8xbf16>
    "tpu.trace_start"() <{level = 10 : i32, message = "bqk,bkd->bqd"}> : () -> ()
    %cst_46 = arith.constant dense<0.000000e+00> : vector<1x8x8xf32>
    %95 = tpu.matmul %93, %94, %cst_46 {dimension_numbers = #tpu.dot_dimension_numbers<[2], [1], [1], [2], [0, 0, 0, 1, 1, 2], [0], [0]>} : vector<1x8x8xbf16>, vector<1x8x8xbf16>, vector<1x8x8xf32> -> vector<1x8x8xf32>
    "tpu.trace_stop"() : () -> ()
    %96 = vector.shape_cast %95 : vector<1x8x8xf32> to vector<8x8xf32>
    %97 = arith.truncf %96 : vector<8x8xf32> to vector<8x8xbf16>
    %98 = vector.extract_strided_slice %7 {offsets = [2, 0, 0], sizes = [1, 8, 32], strides = [1, 1, 1]} : vector<4x8x32xbf16> to vector<1x8x32xbf16>
    %99 = vector.shape_cast %98 : vector<1x8x32xbf16> to vector<8x32xbf16>
    %cst_47 = arith.constant dense<0.000000e+00> : vector<8x32xf32>
    %100 = tpu.matmul %97, %99, %cst_47 {dimension_numbers = #tpu.dot_dimension_numbers<[1], [0], [0], [1], [0, 0, 1, 1], [], []>} : vector<8x8xbf16>, vector<8x32xbf16>, vector<8x32xf32> -> vector<8x32xf32>
    %101 = arith.addf %78, %100 : vector<8x32xf32>
    %102 = vector.extract_strided_slice %24 {offsets = [0, 0, 24], sizes = [1, 8, 8], strides = [1, 1, 1]} : vector<1x8x32xbf16> to vector<1x8x8xbf16>
    %103 = vector.extract_strided_slice %27 {offsets = [0, 0, 24], sizes = [1, 8, 8], strides = [1, 1, 1]} : vector<1x8x32xbf16> to vector<1x8x8xbf16>
    "tpu.trace_start"() <{level = 10 : i32, message = "bqd,bkd->bqk"}> : () -> ()
    %cst_48 = arith.constant dense<0.000000e+00> : vector<1x8x8xf32>
    %104 = tpu.matmul %102, %103, %cst_48 {dimension_numbers = #tpu.dot_dimension_numbers<[2], [2], [1], [1], [0, 0, 0, 1, 1, 1], [0], [0]>} : vector<1x8x8xbf16>, vector<1x8x8xbf16>, vector<1x8x8xf32> -> vector<1x8x8xf32>
    "tpu.trace_stop"() : () -> ()
    %cst_49 = arith.constant dense<0xFF800000> : vector<1x8xf32>
    %105 = vector.multi_reduction <maximumf>, %104, %cst_49 [2] : vector<1x8x8xf32> to vector<1x8xf32>
    %106 = vector.shape_cast %105 : vector<1x8xf32> to vector<1x8x1xf32>
    %107 = vector.broadcast %106 : vector<1x8x1xf32> to vector<1x8x8xf32>
    %108 = arith.subf %104, %107 : vector<1x8x8xf32>
    %109 = math.exp %108 : vector<1x8x8xf32>
    %cst_50 = arith.constant dense<0.000000e+00> : vector<1x8xf32>
    %110 = vector.multi_reduction <add>, %109, %cst_50 [2] : vector<1x8x8xf32> to vector<1x8xf32>
    %111 = vector.shape_cast %110 : vector<1x8xf32> to vector<1x8x1xf32>
    %112 = tpu.reciprocal %111 {approx = true} : vector<1x8x1xf32> -> vector<1x8x1xf32>
    %113 = vector.broadcast %112 : vector<1x8x1xf32> to vector<1x8x8xf32>
    %114 = arith.mulf %109, %113 : vector<1x8x8xf32>
    %115 = arith.addf %92, %114 : vector<1x8x8xf32>
    %116 = arith.truncf %114 : vector<1x8x8xf32> to vector<1x8x8xbf16>
    %117 = vector.extract_strided_slice %30 {offsets = [0, 0, 24], sizes = [1, 8, 8], strides = [1, 1, 1]} : vector<1x8x32xbf16> to vector<1x8x8xbf16>
    "tpu.trace_start"() <{level = 10 : i32, message = "bqk,bkd->bqd"}> : () -> ()
    %cst_51 = arith.constant dense<0.000000e+00> : vector<1x8x8xf32>
    %118 = tpu.matmul %116, %117, %cst_51 {dimension_numbers = #tpu.dot_dimension_numbers<[2], [1], [1], [2], [0, 0, 0, 1, 1, 2], [0], [0]>} : vector<1x8x8xbf16>, vector<1x8x8xbf16>, vector<1x8x8xf32> -> vector<1x8x8xf32>
    "tpu.trace_stop"() : () -> ()
    %119 = vector.shape_cast %118 : vector<1x8x8xf32> to vector<8x8xf32>
    %120 = arith.truncf %119 : vector<8x8xf32> to vector<8x8xbf16>
    %121 = vector.extract_strided_slice %7 {offsets = [3, 0, 0], sizes = [1, 8, 32], strides = [1, 1, 1]} : vector<4x8x32xbf16> to vector<1x8x32xbf16>
    %122 = vector.shape_cast %121 : vector<1x8x32xbf16> to vector<8x32xbf16>
    %cst_52 = arith.constant dense<0.000000e+00> : vector<8x32xf32>
    %123 = tpu.matmul %120, %122, %cst_52 {dimension_numbers = #tpu.dot_dimension_numbers<[1], [0], [0], [1], [0, 0, 1, 1], [], []>} : vector<8x8xbf16>, vector<8x32xbf16>, vector<8x32xf32> -> vector<8x32xf32>
    %124 = arith.addf %101, %123 : vector<8x32xf32>
    %cst_53 = arith.constant 2.500000e-01 : f32
    %125 = vector.broadcast %cst_53 : f32 to vector<1x8x8xf32>
    %126 = arith.mulf %115, %125 : vector<1x8x8xf32>
    %127 = vector.broadcast %8 : vector<1x32xf32> to vector<8x32xf32>
    %128 = arith.addf %124, %127 : vector<8x32xf32>
    %129 = vector.shape_cast %128 : vector<8x32xf32> to vector<1x8x32xf32>
    %130 = arith.truncf %129 : vector<1x8x32xf32> to vector<1x8x32xbf16>
    "tpu.trace_start"() <{level = 10 : i32, message = "bst,btd->bsd"}> : () -> ()
    %cst_54 = arith.constant dense<0.000000e+00> : vector<1x8x32xf32>
    %131 = tpu.matmul %4, %130, %cst_54 {dimension_numbers = #tpu.dot_dimension_numbers<[2], [1], [1], [2], [0, 0, 0, 1, 1, 2], [0], [0]>} : vector<1x8x8xbf16>, vector<1x8x32xbf16>, vector<1x8x32xf32> -> vector<1x8x32xf32>
    "tpu.trace_stop"() : () -> ()
    %132 = arith.addf %3, %131 : vector<1x8x32xf32>
    %133 = vector.shape_cast %132 : vector<1x8x32xf32> to vector<8x32xf32>
    %cst_55 = arith.constant dense<0.000000e+00> : vector<8xf32>
    %134 = vector.multi_reduction <add>, %133, %cst_55 [1] : vector<8x32xf32> to vector<8xf32>
    %135 = vector.shape_cast %134 : vector<8xf32> to vector<8x1xf32>
    %cst_56 = arith.constant 3.200000e+01 : f32
    %136 = vector.broadcast %cst_56 : f32 to vector<8x1xf32>
    %137 = arith.divf %135, %136 : vector<8x1xf32>
    %138 = vector.broadcast %137 : vector<8x1xf32> to vector<8x32xf32>
    %139 = arith.subf %133, %138 : vector<8x32xf32>
    %140 = arith.mulf %139, %139 : vector<8x32xf32>
    %cst_57 = arith.constant dense<0.000000e+00> : vector<8xf32>
    %141 = vector.multi_reduction <add>, %140, %cst_57 [1] : vector<8x32xf32> to vector<8xf32>
    %142 = vector.shape_cast %141 : vector<8xf32> to vector<8x1xf32>
    %cst_58 = arith.constant 3.200000e+01 : f32
    %143 = vector.broadcast %cst_58 : f32 to vector<8x1xf32>
    %144 = arith.divf %142, %143 : vector<8x1xf32>
    %145 = vector.broadcast %137 : vector<8x1xf32> to vector<8x32xf32>
    %146 = arith.subf %133, %145 : vector<8x32xf32>
    %cst_59 = arith.constant 9.99999974E-6 : f32
    %147 = vector.broadcast %cst_59 : f32 to vector<8x1xf32>
    %148 = arith.addf %144, %147 : vector<8x1xf32>
    %149 = math.rsqrt %148 : vector<8x1xf32>
    %150 = vector.broadcast %149 : vector<8x1xf32> to vector<8x32xf32>
    %151 = arith.mulf %146, %150 : vector<8x32xf32>
    %152 = vector.broadcast %13 : vector<1x32xf32> to vector<8x32xf32>
    %153 = arith.mulf %151, %152 : vector<8x32xf32>
    %154 = vector.broadcast %14 : vector<1x32xf32> to vector<8x32xf32>
    %155 = arith.addf %153, %154 : vector<8x32xf32>
    %156 = arith.truncf %155 : vector<8x32xf32> to vector<8x32xbf16>
    %cst_60 = arith.constant dense<0.000000e+00> : vector<8x32xf32>
    %157 = tpu.matmul %156, %9, %cst_60 {dimension_numbers = #tpu.dot_dimension_numbers<[1], [0], [0], [1], [0, 0, 1, 1], [], []>} : vector<8x32xbf16>, vector<32x32xbf16>, vector<8x32xf32> -> vector<8x32xf32>
    %158 = vector.broadcast %10 : vector<1x32xf32> to vector<8x32xf32>
    %159 = arith.addf %157, %158 : vector<8x32xf32>
    %cst_61 = arith.constant 5.000000e-01 : f32
    %160 = vector.broadcast %cst_61 : f32 to vector<8x32xf32>
    %161 = arith.mulf %160, %159 : vector<8x32xf32>
    %cst_62 = arith.constant 0.707106769 : f32
    %162 = vector.broadcast %cst_62 : f32 to vector<8x32xf32>
    %163 = arith.mulf %159, %162 : vector<8x32xf32>
    %164 = math.erf %163 : vector<8x32xf32>
    %cst_63 = arith.constant 1.000000e+00 : f32
    %165 = vector.broadcast %cst_63 : f32 to vector<8x32xf32>
    %166 = arith.addf %165, %164 : vector<8x32xf32>
    %167 = arith.mulf %161, %166 : vector<8x32xf32>
    %168 = arith.truncf %167 : vector<8x32xf32> to vector<8x32xbf16>
    %cst_64 = arith.constant dense<0.000000e+00> : vector<8x32xf32>
    %169 = tpu.matmul %168, %11, %cst_64 {dimension_numbers = #tpu.dot_dimension_numbers<[1], [0], [0], [1], [0, 0, 1, 1], [], []>} : vector<8x32xbf16>, vector<32x32xbf16>, vector<8x32xf32> -> vector<8x32xf32>
    %170 = vector.broadcast %12 : vector<1x32xf32> to vector<8x32xf32>
    %171 = arith.addf %169, %170 : vector<8x32xf32>
    %172 = arith.addf %155, %171 : vector<8x32xf32>
    %cst_65 = arith.constant dense<0.000000e+00> : vector<8xf32>
    %173 = vector.multi_reduction <add>, %172, %cst_65 [1] : vector<8x32xf32> to vector<8xf32>
    %174 = vector.shape_cast %173 : vector<8xf32> to vector<8x1xf32>
    %cst_66 = arith.constant 3.200000e+01 : f32
    %175 = vector.broadcast %cst_66 : f32 to vector<8x1xf32>
    %176 = arith.divf %174, %175 : vector<8x1xf32>
    %177 = vector.broadcast %176 : vector<8x1xf32> to vector<8x32xf32>
    %178 = arith.subf %172, %177 : vector<8x32xf32>
    %179 = arith.mulf %178, %178 : vector<8x32xf32>
    %cst_67 = arith.constant dense<0.000000e+00> : vector<8xf32>
    %180 = vector.multi_reduction <add>, %179, %cst_67 [1] : vector<8x32xf32> to vector<8xf32>
    %181 = vector.shape_cast %180 : vector<8xf32> to vector<8x1xf32>
    %cst_68 = arith.constant 3.200000e+01 : f32
    %182 = vector.broadcast %cst_68 : f32 to vector<8x1xf32>
    %183 = arith.divf %181, %182 : vector<8x1xf32>
    %184 = vector.broadcast %176 : vector<8x1xf32> to vector<8x32xf32>
    %185 = arith.subf %172, %184 : vector<8x32xf32>
    %cst_69 = arith.constant 9.99999974E-6 : f32
    %186 = vector.broadcast %cst_69 : f32 to vector<8x1xf32>
    %187 = arith.addf %183, %186 : vector<8x1xf32>
    %188 = math.rsqrt %187 : vector<8x1xf32>
    %189 = vector.broadcast %188 : vector<8x1xf32> to vector<8x32xf32>
    %190 = arith.mulf %185, %189 : vector<8x32xf32>
    %191 = vector.broadcast %15 : vector<1x32xf32> to vector<8x32xf32>
    %192 = arith.mulf %190, %191 : vector<8x32xf32>
    %193 = vector.broadcast %16 : vector<1x32xf32> to vector<8x32xf32>
    %194 = arith.addf %192, %193 : vector<8x32xf32>
    %195 = vector.shape_cast %194 : vector<8x32xf32> to vector<1x8x32xf32>
    %c0_70 = arith.constant 0 : index
    %c0_71 = arith.constant 0 : index
    %c0_72 = arith.constant 0 : index
    %196 = vector.load %arg20[%c0_70, %c0_71, %c0_72] : memref<1x8x32xf32, #tpu.memory_space<vmem>>, vector<1x8x32xf32>
    tpu.vector_store %arg20[%c0_70, %c0_71, %c0_72], %195 {strides = array<i32>} : memref<1x8x32xf32, #tpu.memory_space<vmem>>, vector<1x8x32xf32>,
    %c0_73 = arith.constant 0 : index
    %c0_74 = arith.constant 0 : index
    %c0_75 = arith.constant 0 : index
    %c0_76 = arith.constant 0 : index
    %197 = vector.load %arg18[%c0_73, %c0_74, %c0_75, %c0_76] : memref<1x1x8x8xf32, #tpu.memory_space<vmem>>, vector<1x1x8x8xf32>
    %198 = vector.shape_cast %197 : vector<1x1x8x8xf32> to vector<1x8x8xf32>
    %199 = vector.shape_cast %126 : vector<1x8x8xf32> to vector<1x1x8x8xf32>
    tpu.vector_store %arg18[%c0_73, %c0_74, %c0_75, %c0_76], %199 {strides = array<i32>} : memref<1x1x8x8xf32, #tpu.memory_space<vmem>>, vector<1x1x8x8xf32>,
    %c1_i32 = arith.constant 1 : i32
    %200 = arith.cmpi eq, %arg1, %c1_i32 : i32
    %201 = arith.extui %200 : i1 to i32
    %c0_i32_77 = arith.constant 0 : i32
    %202 = arith.cmpi ne, %201, %c0_i32_77 : i32
    scf.if %202 {
      %cst_78 = arith.constant dense<0.000000e+00> : vector<1x32xf32>
      %203 = vector.multi_reduction <add>, %195, %cst_78 [1] : vector<1x8x32xf32> to vector<1x32xf32>
      %cst_79 = arith.constant 8.000000e+00 : f32
      %204 = vector.broadcast %cst_79 : f32 to vector<1x32xf32>
      %205 = arith.divf %203, %204 : vector<1x32xf32>
      %206 = arith.truncf %205 : vector<1x32xf32> to vector<1x32xbf16>
      %c0_80 = arith.constant 0 : index
      %c0_81 = arith.constant 0 : index
      %207 = vector.load %arg16[%c0_80, %c0_81] : memref<32x8xbf16, #tpu.memory_space<vmem>>, vector<32x8xbf16>
      %cst_82 = arith.constant dense<0.000000e+00> : vector<1x8xf32>
      %208 = tpu.matmul %206, %207, %cst_82 {dimension_numbers = #tpu.dot_dimension_numbers<[1], [0], [0], [1], [0, 0, 1, 1], [], []>} : vector<1x32xbf16>, vector<32x8xbf16>, vector<1x8xf32> -> vector<1x8xf32>
      %c0_83 = arith.constant 0 : index
      %c0_84 = arith.constant 0 : index
      %209 = vector.load %arg17[%c0_83, %c0_84] : memref<1x8xf32, #tpu.memory_space<vmem>>, vector<1x8xf32>
      %210 = arith.addf %208, %209 : vector<1x8xf32>
      %c0_85 = arith.constant 0 : index
      %c0_86 = arith.constant 0 : index
      %c0_87 = arith.constant 0 : index
      %211 = vector.load %arg19[%c0_85, %c0_86, %c0_87] : memref<1x1x8xf32, #tpu.memory_space<vmem>>, vector<1x1x8xf32>
      %212 = vector.shape_cast %211 : vector<1x1x8xf32> to vector<1x8xf32>
      %213 = vector.shape_cast %210 : vector<1x8xf32> to vector<1x1x8xf32>
      tpu.vector_store %arg19[%c0_85, %c0_86, %c0_87], %213 {strides = array<i32>} : memref<1x1x8xf32, #tpu.memory_space<vmem>>, vector<1x1x8xf32>,
    } else {
    }
    return
  }
  func.func @transform_0(%arg0: i32, %arg1: i32) -> (i32, i32, i32) {
    %c0_i32 = arith.constant 0 : i32
    %c0_i32_0 = arith.constant 0 : i32
    %c0_i32_1 = arith.constant 0 : i32
    return %arg0, %c0_i32, %c0_i32_0 : i32, i32, i32
  }
  func.func @transform_1(%arg0: i32, %arg1: i32) -> (i32, i32, i32) {
    %c0_i32 = arith.constant 0 : i32
    %c0_i32_0 = arith.constant 0 : i32
    %c0_i32_1 = arith.constant 0 : i32
    return %arg0, %c0_i32, %c0_i32_0 : i32, i32, i32
  }
  func.func @transform_2(%arg0: i32, %arg1: i32) -> (i32, i32) {
    %c0_i32 = arith.constant 0 : i32
    %c0_i32_0 = arith.constant 0 : i32
    %c0_i32_1 = arith.constant 0 : i32
    return %c0_i32, %c0_i32_0 : i32, i32
  }
  func.func @transform_3(%arg0: i32, %arg1: i32) -> (i32, i32) {
    %c0_i32 = arith.constant 0 : i32
    %c0_i32_0 = arith.constant 0 : i32
    %c0_i32_1 = arith.constant 0 : i32
    return %c0_i32, %c0_i32_0 : i32, i32
  }
  func.func @transform_4(%arg0: i32, %arg1: i32) -> (i32, i32, i32) {
    %c0_i32 = arith.constant 0 : i32
    %c0_i32_0 = arith.constant 0 : i32
    %c0_i32_1 = arith.constant 0 : i32
    %c0_i32_2 = arith.constant 0 : i32
    return %c0_i32, %c0_i32_0, %c0_i32_1 : i32, i32, i32
  }
  func.func @transform_5(%arg0: i32, %arg1: i32) -> (i32, i32) {
    %c0_i32 = arith.constant 0 : i32
    %c0_i32_0 = arith.constant 0 : i32
    %c0_i32_1 = arith.constant 0 : i32
    return %c0_i32, %c0_i32_0 : i32, i32
  }
  func.func @transform_6(%arg0: i32, %arg1: i32) -> (i32, i32) {
    %c0_i32 = arith.constant 0 : i32
    %c0_i32_0 = arith.constant 0 : i32
    %c0_i32_1 = arith.constant 0 : i32
    return %c0_i32, %c0_i32_0 : i32, i32
  }
  func.func @transform_7(%arg0: i32, %arg1: i32) -> (i32, i32) {
    %c0_i32 = arith.constant 0 : i32
    %c0_i32_0 = arith.constant 0 : i32
    %c0_i32_1 = arith.constant 0 : i32
    return %c0_i32, %c0_i32_0 : i32, i32
  }
  func.func @transform_8(%arg0: i32, %arg1: i32) -> (i32, i32) {
    %c0_i32 = arith.constant 0 : i32
    %c0_i32_0 = arith.constant 0 : i32
    %c0_i32_1 = arith.constant 0 : i32
    return %c0_i32, %c0_i32_0 : i32, i32
  }
  func.func @transform_9(%arg0: i32, %arg1: i32) -> (i32, i32) {
    %c0_i32 = arith.constant 0 : i32
    %c0_i32_0 = arith.constant 0 : i32
    %c0_i32_1 = arith.constant 0 : i32
    return %c0_i32, %c0_i32_0 : i32, i32
  }
  func.func @transform_10(%arg0: i32, %arg1: i32) -> (i32, i32) {
    %c0_i32 = arith.constant 0 : i32
    %c0_i32_0 = arith.constant 0 : i32
    %c0_i32_1 = arith.constant 0 : i32
    return %c0_i32, %c0_i32_0 : i32, i32
  }
  func.func @transform_11(%arg0: i32, %arg1: i32) -> (i32, i32) {
    %c0_i32 = arith.constant 0 : i32
    %c0_i32_0 = arith.constant 0 : i32
    %c0_i32_1 = arith.constant 0 : i32
    return %c0_i32, %c0_i32_0 : i32, i32
  }
  func.func @transform_12(%arg0: i32, %arg1: i32) -> (i32, i32) {
    %c0_i32 = arith.constant 0 : i32
    %c0_i32_0 = arith.constant 0 : i32
    %c0_i32_1 = arith.constant 0 : i32
    return %c0_i32, %c0_i32_0 : i32, i32
  }
  func.func @transform_13(%arg0: i32, %arg1: i32) -> (i32, i32) {
    %c0_i32 = arith.constant 0 : i32
    %c0_i32_0 = arith.constant 0 : i32
    %c0_i32_1 = arith.constant 0 : i32
    return %c0_i32, %c0_i32_0 : i32, i32
  }
  func.func @transform_14(%arg0: i32, %arg1: i32) -> (i32, i32) {
    %c0_i32 = arith.constant 0 : i32
    %c0_i32_0 = arith.constant 0 : i32
    %c0_i32_1 = arith.constant 0 : i32
    return %c0_i32, %c0_i32_0 : i32, i32
  }
  func.func @transform_15(%arg0: i32, %arg1: i32) -> (i32, i32) {
    %c0_i32 = arith.constant 0 : i32
    %c0_i32_0 = arith.constant 0 : i32
    %c0_i32_1 = arith.constant 0 : i32
    return %c0_i32, %c0_i32_0 : i32, i32
  }
  func.func @transform_16(%arg0: i32, %arg1: i32) -> (i32, i32, i32, i32) {
    %c0_i32 = arith.constant 0 : i32
    %c0_i32_0 = arith.constant 0 : i32
    %c0_i32_1 = arith.constant 0 : i32
    return %arg1, %arg0, %c0_i32, %c0_i32_0 : i32, i32, i32, i32
  }
  func.func @transform_17(%arg0: i32, %arg1: i32) -> (i32, i32, i32) {
    %c0_i32 = arith.constant 0 : i32
    %c0_i32_0 = arith.constant 0 : i32
    %c0_i32_1 = arith.constant 0 : i32
    return %arg0, %c0_i32, %c0_i32_0 : i32, i32, i32
  }
}

</mosaic_0001>

<llo_original>
// kernel: tpu_custom_call.1
$region0: #{tpu_custom_call.1}
  #allocation0 [shape = 'u32[]', space=smem, size = 0x4, offset = 0x4, fixed_abs, tag = 'smem constant byte address 0x4 - core index']
  #allocation1 [shape = 'u32[72,128]{1,0:T(1,128)}', space=vmem, size = 0x9000, scoped, tag = 'internal scratch']
  #allocation2 [shape = 'f32[1,8,32]{2,1,0:T(8,128)}', space=vmem, size = 0x1000, scoped, tag = 'scratch operand']
  %s0 = inlined_call_operand.vmem [shape: f32[2,8,32], index: 0, kind: input, shape index: {}]
  %s1 = inlined_call_operand.hbm [shape: bf16[2,8,8], index: 1, kind: input, shape index: {}]
  %s2 = inlined_call_operand.hbm [shape: bf16[32,96], index: 2, kind: input, shape index: {}]
  %s3 = inlined_call_operand.vmem [shape: f32[1,96], index: 3, kind: input, shape index: {}]
  %s4 = inlined_call_operand.hbm [shape: bf16[4,8,32], index: 4, kind: input, shape index: {}]
  %s5 = inlined_call_operand.vmem [shape: f32[1,32], index: 5, kind: input, shape index: {}]
  %s6 = inlined_call_operand.hbm [shape: bf16[32,32], index: 6, kind: input, shape index: {}]
  %s7 = inlined_call_operand.vmem [shape: f32[1,32], index: 7, kind: input, shape index: {}]
  %s8 = inlined_call_operand.hbm [shape: bf16[32,32], index: 8, kind: input, shape index: {}]
  %s9 = inlined_call_operand.vmem [shape: f32[1,32], index: 9, kind: input, shape index: {}]
  %s10 = inlined_call_operand.vmem [shape: f32[1,32], index: 10, kind: input, shape index: {}]
  %s11 = inlined_call_operand.vmem [shape: f32[1,32], index: 11, kind: input, shape index: {}]
  %s12 = inlined_call_operand.vmem [shape: f32[1,32], index: 12, kind: input, shape index: {}]
  %s13 = inlined_call_operand.vmem [shape: f32[1,32], index: 13, kind: input, shape index: {}]
  %s14 = inlined_call_operand.vmem [shape: bf16[32,8], index: 14, kind: input, shape index: {}]
  %s15 = inlined_call_operand.vmem [shape: f32[1,8], index: 15, kind: input, shape index: {}]
  %s16 = inlined_call_operand.hbm [shape: f32[2,2,8,8], index: 16, kind: output, shape index: {0}]
  %s17 = inlined_call_operand.hbm [shape: f32[2,1,8], index: 17, kind: output, shape index: {1}]
  %18 = xla_tuple %s16, %s17
  %s19 = sld [smem:[#allocation0]]
  $region133: #{tpu_custom_call.1} parent=0
    _
  %s21 = ssub.s32 1, %s19
  %s22 = scalar_select 0, %s21, %s19
  $region1: #{tpu_custom_call.1} parent=0
    #allocation3 [shape = 'u8[4096]{0}', space=vmem, size = 0x1000, scoped, tag = 'input window, operand 1']
    #allocation4 [shape = 's32[2]{0}', space=sflag, size = 0x8, scoped, tag = 'scoped memory for tpu_custom_call.1']
    #allocation5 [shape = 's32[2]{0}', space=sflag, size = 0x8, scoped, tag = 'scoped memory for tpu_custom_call.1']
    #allocation6 [shape = 'u8[8192]{0}', space=vmem, size = 0x2000, scoped, tag = 'input window, operand 2, single buffered']
    #allocation7 [shape = 's32[1]{0}', space=sflag, size = 0x4, scoped, tag = 'scoped memory for tpu_custom_call.1']
    #allocation8 [shape = 'u8[8192]{0}', space=vmem, size = 0x2000, scoped, tag = 'input window, operand 4, single buffered']
    #allocation9 [shape = 'u8[8192]{0}', space=vmem, size = 0x2000, scoped, tag = 'input window, operand 6, single buffered']
    #allocation10 [shape = 's32[1]{0}', space=sflag, size = 0x4, scoped, tag = 'scoped memory for tpu_custom_call.1']
    #allocation11 [shape = 'u8[8192]{0}', space=vmem, size = 0x2000, scoped, tag = 'input window, operand 8, single buffered']
    #allocation12 [shape = 'u8[8192]{0}', space=vmem, size = 0x2000, scoped, tag = 'output window, operand 0']
    #allocation13 [shape = 'u8[1024]{0}', space=vmem, size = 0x400, scoped, tag = 'output window, operand 1']
    #allocation14 [shape = 's32[2]{0}', space=sflag, size = 0x8, scoped, tag = 'scoped memory for tpu_custom_call.1']
    %23 = vsyncpa [#allocation4], 0
    %s24 = scalar_lea.sflag [#allocation4], 1
    %25 = vsyncpa %s24, 0
    %26 = vsyncpa [#allocation7], 0
    %27 = vsyncpa [#allocation10], 0
    %28 = vsyncpa [#allocation5], 0
    %s29 = scalar_lea.sflag [#allocation5], 1
    %30 = vsyncpa %s29, 0
    %31 = vsyncpa [#allocation14], 0
    %s32 = scalar_lea.sflag [#allocation14], 1
    %33 = vsyncpa %s32, 0
    loop: start=0, step=1, limit=6
    $region2: #{tpu_custom_call.1} parent=1 // loop_pre_header
      _
    $region3: #{tpu_custom_call.1} parent=1 // loop_header
      %s35 = sphi 0, %s39
      %p36 = scmp.ge.s32.totalorder %s35, 6
      %s42 = sphi 0, %s54
      %s43 = sphi 0, %s50
      %s44 = sphi 0, %s42
      %s45 = sphi 0, %s43
      %s46 = sphi 0, %s44
      %s47 = sphi 0, %s45
      %s57 = sphi 0, %s59
      %s60 = sphi 0, %s57
      %s61 = sphi 0, %s60
      %s77 = sphi 0, %s61
      %s83 = sphi 0, %s85
      %s86 = sphi 0, %s83
      %s87 = sphi 0, %s86
      %s103 = sphi 0, %s87
      %s107 = sphi 0, %s107
      %s109 = sphi 0, %s107
      %s110 = sphi 0, %s109
      %s124 = sphi 0, %s110
      %s128 = sphi 0, %s128
      %s130 = sphi 0, %s128
      %s131 = sphi 0, %s130
      %s145 = sphi 0, %s131
      %s149 = sphi 0, %s149
      %s151 = sphi 0, %s149
      %s152 = sphi 0, %s151
      %s166 = sphi 0, %s152
      %s170 = sphi 0, %s170
      %s172 = sphi 0, %s170
      %s173 = sphi 0, %s172
      %s187 = sphi 0, %s173
      %s191 = sphi 0, %s191
      %s193 = sphi 0, %s191
      %s194 = sphi 0, %s193
      %s208 = sphi 0, %s194
      %s212 = sphi 0, %s212
      %s214 = sphi 0, %s212
      %s215 = sphi 0, %s214
      %s229 = sphi 0, %s215
      %s233 = sphi 0, %s233
      %s235 = sphi 0, %s233
      %s236 = sphi 0, %s235
      %s250 = sphi 0, %s236
      %s254 = sphi 0, %s254
      %s256 = sphi 0, %s254
      %s257 = sphi 0, %s256
      %s271 = sphi 0, %s257
      %s275 = sphi 0, %s275
      %s277 = sphi 0, %s275
      %s278 = sphi 0, %s277
      %s292 = sphi 0, %s278
      %s296 = sphi 0, %s296
      %s298 = sphi 0, %s296
      %s299 = sphi 0, %s298
      %s313 = sphi 0, %s299
      %s317 = sphi 0, %s317
      %s319 = sphi 0, %s317
      %s320 = sphi 0, %s319
      %s334 = sphi 0, %s320
      %s338 = sphi 0, %s338
      %s340 = sphi 0, %s338
      %s341 = sphi 0, %s340
      %s355 = sphi 0, %s341
      %s359 = sphi 0, %s359
      %s361 = sphi 0, %s359
      %s362 = sphi 0, %s361
      %s376 = sphi 0, %s362
      %s380 = sphi 0, %s380
      %s382 = sphi 0, %s380
      %s383 = sphi 0, %s382
      %s397 = sphi 0, %s383
      %s405 = sphi 0, %s407
      %s408 = sphi 0, %s405
      %s409 = sphi 0, %s408
      %s425 = sphi 0, %s409
      %s431 = sphi 0, %s433
      %s434 = sphi 0, %s431
      %s435 = sphi 0, %s434
      %s451 = sphi 0, %s435
    $region4: #{tpu_custom_call.1} parent=1 // loop_header_branch
      %38 = sbr.rel (%p36) target = $region8
    $region5: #{tpu_custom_call.1} parent=1 // loop_body
      %s40 = ssub.s32 %s35, 1
      %s41 = ssub.s32 %s35, 2
      %s48 = sadd.s32 1, %s43
      %p49 = scmp.ge.s32.totalorder %s48, 2
      %s50 = scalar_select %p49, 0, %s48
      %s51 = sadd.s32 1, %s42
      %s52 = scalar_select %p49, %s51, %s42
      %p53 = scmp.ge.s32.totalorder %s52, 2
      %s54 = scalar_select %p53, 0, %s52
      %s55 = ssub.s32 %s42, %s54
      %p56 = scmp.eq.s32.totalorder %s55, 0
      %s58 = sadd.s32 %s57, 1
      %s59 = scalar_select %p56, %s57, %s58
      %p62 = pneg %p56
      %p63 = scmp.eq.s32.totalorder %s35, 3
      %p64 = por %p62, %p63
      %p65 = scmp.ne.s32.totalorder %s57, %s60
      %p66 = scmp.eq.s32.totalorder %s35, 0
      %p67 = por %p65, %p66
      %p68 = scmp.ne.s32.totalorder %s57, %s60
      %p69 = scmp.eq.s32.totalorder %s40, 3
      %p70 = por %p68, %p69
      %p71 = scmp.ne.s32.totalorder %s60, %s61
      %p72 = scmp.eq.s32.totalorder %s40, 0
      %p73 = por %p71, %p72
      %p74 = scmp.ne.s32.totalorder %s60, %s61
      %p75 = scmp.eq.s32.totalorder %s41, 3
      %p76 = por %p74, %p75
      %p78 = scmp.ne.s32.totalorder %s61, %s77
      %p79 = scmp.eq.s32.totalorder %s41, 0
      %p80 = por %p78, %p79
      %s81 = ssub.s32 %s42, %s54
      %p82 = scmp.eq.s32.totalorder %s81, 0
      %s84 = sadd.s32 %s83, 1
      %s85 = scalar_select %p82, %s83, %s84
      %p88 = pneg %p82
      %p89 = scmp.eq.s32.totalorder %s35, 3
      %p90 = por %p88, %p89
      %p91 = scmp.ne.s32.totalorder %s83, %s86
      %p92 = scmp.eq.s32.totalorder %s35, 0
      %p93 = por %p91, %p92
      %p94 = scmp.ne.s32.totalorder %s83, %s86
      %p95 = scmp.eq.s32.totalorder %s40, 3
      %p96 = por %p94, %p95
      %p97 = scmp.ne.s32.totalorder %s86, %s87
      %p98 = scmp.eq.s32.totalorder %s40, 0
      %p99 = por %p97, %p98
      %p100 = scmp.ne.s32.totalorder %s86, %s87
      %p101 = scmp.eq.s32.totalorder %s41, 3
      %p102 = por %p100, %p101
      %p104 = scmp.ne.s32.totalorder %s87, %s103
      %p105 = scmp.eq.s32.totalorder %s41, 0
      %p106 = por %p104, %p105
      %s108 = sadd.s32 %s107, 1
      %p111 = scmp.eq.s32.totalorder %s35, 3
      %p112 = scmp.ne.s32.totalorder %s107, %s109
      %p113 = scmp.eq.s32.totalorder %s35, 0
      %p114 = por %p112, %p113
      %p115 = scmp.ne.s32.totalorder %s107, %s109
      %p116 = scmp.eq.s32.totalorder %s40, 3
      %p117 = por %p115, %p116
      %p118 = scmp.ne.s32.totalorder %s109, %s110
      %p119 = scmp.eq.s32.totalorder %s40, 0
      %p120 = por %p118, %p119
      %p121 = scmp.ne.s32.totalorder %s109, %s110
      %p122 = scmp.eq.s32.totalorder %s41, 3
      %p123 = por %p121, %p122
      %p125 = scmp.ne.s32.totalorder %s110, %s124
      %p126 = scmp.eq.s32.totalorder %s41, 0
      %p127 = por %p125, %p126
      %s129 = sadd.s32 %s128, 1
      %p132 = scmp.eq.s32.totalorder %s35, 3
      %p133 = scmp.ne.s32.totalorder %s128, %s130
      %p134 = scmp.eq.s32.totalorder %s35, 0
      %p135 = por %p133, %p134
      %p136 = scmp.ne.s32.totalorder %s128, %s130
      %p137 = scmp.eq.s32.totalorder %s40, 3
      %p138 = por %p136, %p137
      %p139 = scmp.ne.s32.totalorder %s130, %s131
      %p140 = scmp.eq.s32.totalorder %s40, 0
      %p141 = por %p139, %p140
      %p142 = scmp.ne.s32.totalorder %s130, %s131
      %p143 = scmp.eq.s32.totalorder %s41, 3
      %p144 = por %p142, %p143
      %p146 = scmp.ne.s32.totalorder %s131, %s145
      %p147 = scmp.eq.s32.totalorder %s41, 0
      %p148 = por %p146, %p147
      %s150 = sadd.s32 %s149, 1
      %p153 = scmp.eq.s32.totalorder %s35, 3
      %p154 = scmp.ne.s32.totalorder %s149, %s151
      %p155 = scmp.eq.s32.totalorder %s35, 0
      %p156 = por %p154, %p155
      %p157 = scmp.ne.s32.totalorder %s149, %s151
      %p158 = scmp.eq.s32.totalorder %s40, 3
      %p159 = por %p157, %p158
      %p160 = scmp.ne.s32.totalorder %s151, %s152
      %p161 = scmp.eq.s32.totalorder %s40, 0
      %p162 = por %p160, %p161
      %p163 = scmp.ne.s32.totalorder %s151, %s152
      %p164 = scmp.eq.s32.totalorder %s41, 3
      %p165 = por %p163, %p164
      %p167 = scmp.ne.s32.totalorder %s152, %s166
      %p168 = scmp.eq.s32.totalorder %s41, 0
      %p169 = por %p167, %p168
      %s171 = sadd.s32 %s170, 1
      %p174 = scmp.eq.s32.totalorder %s35, 3
      %p175 = scmp.ne.s32.totalorder %s170, %s172
      %p176 = scmp.eq.s32.totalorder %s35, 0
      %p177 = por %p175, %p176
      %p178 = scmp.ne.s32.totalorder %s170, %s172
      %p179 = scmp.eq.s32.totalorder %s40, 3
      %p180 = por %p178, %p179
      %p181 = scmp.ne.s32.totalorder %s172, %s173
      %p182 = scmp.eq.s32.totalorder %s40, 0
      %p183 = por %p181, %p182
      %p184 = scmp.ne.s32.totalorder %s172, %s173
      %p185 = scmp.eq.s32.totalorder %s41, 3
      %p186 = por %p184, %p185
      %p188 = scmp.ne.s32.totalorder %s173, %s187
      %p189 = scmp.eq.s32.totalorder %s41, 0
      %p190 = por %p188, %p189
      %s192 = sadd.s32 %s191, 1
      %p195 = scmp.eq.s32.totalorder %s35, 3
      %p196 = scmp.ne.s32.totalorder %s191, %s193
      %p197 = scmp.eq.s32.totalorder %s35, 0
      %p198 = por %p196, %p197
      %p199 = scmp.ne.s32.totalorder %s191, %s193
      %p200 = scmp.eq.s32.totalorder %s40, 3
      %p201 = por %p199, %p200
      %p202 = scmp.ne.s32.totalorder %s193, %s194
      %p203 = scmp.eq.s32.totalorder %s40, 0
      %p204 = por %p202, %p203
      %p205 = scmp.ne.s32.totalorder %s193, %s194
      %p206 = scmp.eq.s32.totalorder %s41, 3
      %p207 = por %p205, %p206
      %p209 = scmp.ne.s32.totalorder %s194, %s208
      %p210 = scmp.eq.s32.totalorder %s41, 0
      %p211 = por %p209, %p210
      %s213 = sadd.s32 %s212, 1
      %p216 = scmp.eq.s32.totalorder %s35, 3
      %p217 = scmp.ne.s32.totalorder %s212, %s214
      %p218 = scmp.eq.s32.totalorder %s35, 0
      %p219 = por %p217, %p218
      %p220 = scmp.ne.s32.totalorder %s212, %s214
      %p221 = scmp.eq.s32.totalorder %s40, 3
      %p222 = por %p220, %p221
      %p223 = scmp.ne.s32.totalorder %s214, %s215
      %p224 = scmp.eq.s32.totalorder %s40, 0
      %p225 = por %p223, %p224
      %p226 = scmp.ne.s32.totalorder %s214, %s215
      %p227 = scmp.eq.s32.totalorder %s41, 3
      %p228 = por %p226, %p227
      %p230 = scmp.ne.s32.totalorder %s215, %s229
      %p231 = scmp.eq.s32.totalorder %s41, 0
      %p232 = por %p230, %p231
      %s234 = sadd.s32 %s233, 1
      %p237 = scmp.eq.s32.totalorder %s35, 3
      %p238 = scmp.ne.s32.totalorder %s233, %s235
      %p239 = scmp.eq.s32.totalorder %s35, 0
      %p240 = por %p238, %p239
      %p241 = scmp.ne.s32.totalorder %s233, %s235
      %p242 = scmp.eq.s32.totalorder %s40, 3
      %p243 = por %p241, %p242
      %p244 = scmp.ne.s32.totalorder %s235, %s236
      %p245 = scmp.eq.s32.totalorder %s40, 0
      %p246 = por %p244, %p245
      %p247 = scmp.ne.s32.totalorder %s235, %s236
      %p248 = scmp.eq.s32.totalorder %s41, 3
      %p249 = por %p247, %p248
      %p251 = scmp.ne.s32.totalorder %s236, %s250
      %p252 = scmp.eq.s32.totalorder %s41, 0
      %p253 = por %p251, %p252
      %s255 = sadd.s32 %s254, 1
      %p258 = scmp.eq.s32.totalorder %s35, 3
      %p259 = scmp.ne.s32.totalorder %s254, %s256
      %p260 = scmp.eq.s32.totalorder %s35, 0
      %p261 = por %p259, %p260
      %p262 = scmp.ne.s32.totalorder %s254, %s256
      %p263 = scmp.eq.s32.totalorder %s40, 3
      %p264 = por %p262, %p263
      %p265 = scmp.ne.s32.totalorder %s256, %s257
      %p266 = scmp.eq.s32.totalorder %s40, 0
      %p267 = por %p265, %p266
      %p268 = scmp.ne.s32.totalorder %s256, %s257
      %p269 = scmp.eq.s32.totalorder %s41, 3
      %p270 = por %p268, %p269
      %p272 = scmp.ne.s32.totalorder %s257, %s271
      %p273 = scmp.eq.s32.totalorder %s41, 0
      %p274 = por %p272, %p273
      %s276 = sadd.s32 %s275, 1
      %p279 = scmp.eq.s32.totalorder %s35, 3
      %p280 = scmp.ne.s32.totalorder %s275, %s277
      %p281 = scmp.eq.s32.totalorder %s35, 0
      %p282 = por %p280, %p281
      %p283 = scmp.ne.s32.totalorder %s275, %s277
      %p284 = scmp.eq.s32.totalorder %s40, 3
      %p285 = por %p283, %p284
      %p286 = scmp.ne.s32.totalorder %s277, %s278
      %p287 = scmp.eq.s32.totalorder %s40, 0
      %p288 = por %p286, %p287
      %p289 = scmp.ne.s32.totalorder %s277, %s278
      %p290 = scmp.eq.s32.totalorder %s41, 3
      %p291 = por %p289, %p290
      %p293 = scmp.ne.s32.totalorder %s278, %s292
      %p294 = scmp.eq.s32.totalorder %s41, 0
      %p295 = por %p293, %p294
      %s297 = sadd.s32 %s296, 1
      %p300 = scmp.eq.s32.totalorder %s35, 3
      %p301 = scmp.ne.s32.totalorder %s296, %s298
      %p302 = scmp.eq.s32.totalorder %s35, 0
      %p303 = por %p301, %p302
      %p304 = scmp.ne.s32.totalorder %s296, %s298
      %p305 = scmp.eq.s32.totalorder %s40, 3
      %p306 = por %p304, %p305
      %p307 = scmp.ne.s32.totalorder %s298, %s299
      %p308 = scmp.eq.s32.totalorder %s40, 0
      %p309 = por %p307, %p308
      %p310 = scmp.ne.s32.totalorder %s298, %s299
      %p311 = scmp.eq.s32.totalorder %s41, 3
      %p312 = por %p310, %p311
      %p314 = scmp.ne.s32.totalorder %s299, %s313
      %p315 = scmp.eq.s32.totalorder %s41, 0
      %p316 = por %p314, %p315
      %s318 = sadd.s32 %s317, 1
      %p321 = scmp.eq.s32.totalorder %s35, 3
      %p322 = scmp.ne.s32.totalorder %s317, %s319
      %p323 = scmp.eq.s32.totalorder %s35, 0
      %p324 = por %p322, %p323
      %p325 = scmp.ne.s32.totalorder %s317, %s319
      %p326 = scmp.eq.s32.totalorder %s40, 3
      %p327 = por %p325, %p326
      %p328 = scmp.ne.s32.totalorder %s319, %s320
      %p329 = scmp.eq.s32.totalorder %s40, 0
      %p330 = por %p328, %p329
      %p331 = scmp.ne.s32.totalorder %s319, %s320
      %p332 = scmp.eq.s32.totalorder %s41, 3
      %p333 = por %p331, %p332
      %p335 = scmp.ne.s32.totalorder %s320, %s334
      %p336 = scmp.eq.s32.totalorder %s41, 0
      %p337 = por %p335, %p336
      %s339 = sadd.s32 %s338, 1
      %p342 = scmp.eq.s32.totalorder %s35, 3
      %p343 = scmp.ne.s32.totalorder %s338, %s340
      %p344 = scmp.eq.s32.totalorder %s35, 0
      %p345 = por %p343, %p344
      %p346 = scmp.ne.s32.totalorder %s338, %s340
      %p347 = scmp.eq.s32.totalorder %s40, 3
      %p348 = por %p346, %p347
      %p349 = scmp.ne.s32.totalorder %s340, %s341
      %p350 = scmp.eq.s32.totalorder %s40, 0
      %p351 = por %p349, %p350
      %p352 = scmp.ne.s32.totalorder %s340, %s341
      %p353 = scmp.eq.s32.totalorder %s41, 3
      %p354 = por %p352, %p353
      %p356 = scmp.ne.s32.totalorder %s341, %s355
      %p357 = scmp.eq.s32.totalorder %s41, 0
      %p358 = por %p356, %p357
      %s360 = sadd.s32 %s359, 1
      %p363 = scmp.eq.s32.totalorder %s35, 3
      %p364 = scmp.ne.s32.totalorder %s359, %s361
      %p365 = scmp.eq.s32.totalorder %s35, 0
      %p366 = por %p364, %p365
      %p367 = scmp.ne.s32.totalorder %s359, %s361
      %p368 = scmp.eq.s32.totalorder %s40, 3
      %p369 = por %p367, %p368
      %p370 = scmp.ne.s32.totalorder %s361, %s362
      %p371 = scmp.eq.s32.totalorder %s40, 0
      %p372 = por %p370, %p371
      %p373 = scmp.ne.s32.totalorder %s361, %s362
      %p374 = scmp.eq.s32.totalorder %s41, 3
      %p375 = por %p373, %p374
      %p377 = scmp.ne.s32.totalorder %s362, %s376
      %p378 = scmp.eq.s32.totalorder %s41, 0
      %p379 = por %p377, %p378
      %s381 = sadd.s32 %s380, 1
      %p384 = scmp.eq.s32.totalorder %s35, 3
      %p385 = scmp.ne.s32.totalorder %s380, %s382
      %p386 = scmp.eq.s32.totalorder %s35, 0
      %p387 = por %p385, %p386
      %p388 = scmp.ne.s32.totalorder %s380, %s382
      %p389 = scmp.eq.s32.totalorder %s40, 3
      %p390 = por %p388, %p389
      %p391 = scmp.ne.s32.totalorder %s382, %s383
      %p392 = scmp.eq.s32.totalorder %s40, 0
      %p393 = por %p391, %p392
      %p394 = scmp.ne.s32.totalorder %s382, %s383
      %p395 = scmp.eq.s32.totalorder %s41, 3
      %p396 = por %p394, %p395
      %p398 = scmp.ne.s32.totalorder %s383, %s397
      %p399 = scmp.eq.s32.totalorder %s41, 0
      %p400 = por %p398, %p399
      %s401 = ssub.s32 %s43, %s50
      %s402 = ssub.s32 %s42, %s54
      %s403 = sor.u32 %s401, %s402
      %p404 = scmp.eq.s32.totalorder %s403, 0
      %s406 = sadd.s32 %s405, 1
      %s407 = scalar_select %p404, %s405, %s406
      %p410 = pneg %p404
      %p411 = scmp.eq.s32.totalorder %s35, 3
      %p412 = por %p410, %p411
      %p413 = scmp.ne.s32.totalorder %s405, %s408
      %p414 = scmp.eq.s32.totalorder %s35, 0
      %p415 = por %p413, %p414
      %p416 = scmp.ne.s32.totalorder %s405, %s408
      %p417 = scmp.eq.s32.totalorder %s40, 3
      %p418 = por %p416, %p417
      %p419 = scmp.ne.s32.totalorder %s408, %s409
      %p420 = scmp.eq.s32.totalorder %s40, 0
      %p421 = por %p419, %p420
      %p422 = scmp.ne.s32.totalorder %s408, %s409
      %p423 = scmp.eq.s32.totalorder %s41, 3
      %p424 = por %p422, %p423
      %p426 = scmp.ne.s32.totalorder %s409, %s425
      %p427 = scmp.eq.s32.totalorder %s41, 0
      %p428 = por %p426, %p427
      %s429 = ssub.s32 %s42, %s54
      %p430 = scmp.eq.s32.totalorder %s429, 0
      %s432 = sadd.s32 %s431, 1
      %s433 = scalar_select %p430, %s431, %s432
      %p436 = pneg %p430
      %p437 = scmp.eq.s32.totalorder %s35, 3
      %p438 = por %p436, %p437
      %p439 = scmp.ne.s32.totalorder %s431, %s434
      %p440 = scmp.eq.s32.totalorder %s35, 0
      %p441 = por %p439, %p440
      %p442 = scmp.ne.s32.totalorder %s431, %s434
      %p443 = scmp.eq.s32.totalorder %s40, 3
      %p444 = por %p442, %p443
      %p445 = scmp.ne.s32.totalorder %s434, %s435
      %p446 = scmp.eq.s32.totalorder %s40, 0
      %p447 = por %p445, %p446
      %p448 = scmp.ne.s32.totalorder %s434, %s435
      %p449 = scmp.eq.s32.totalorder %s41, 3
      %p450 = por %p448, %p449
      %p452 = scmp.ne.s32.totalorder %s435, %s451
      %p453 = scmp.eq.s32.totalorder %s41, 0
      %p454 = por %p452, %p453
      %p455 = scmp.le.s32.totalorder 1, %s35
      %p456 = scmp.lt.s32.totalorder %s35, 5
      %p457 = pnand %p455, %p456
      %p458 = pneg %p457
      // Predicated region
      $region9: #{tpu_custom_call.1} parent=5 // pred_check
        _
      $region10: #{tpu_custom_call.1} parent=5 // pred_check_branch
        %460 = sbr.rel (%p457) target = $region12
      $region11: #{tpu_custom_call.1} parent=5 // pred_region
        %s461 = ssub.s32 %s35, 1
        // Predicated region
        $region13: #{tpu_custom_call.1} parent=11 // pred_check
          %p462 = pneg %p120
        $region14: #{tpu_custom_call.1} parent=11 // pred_check_branch
          %464 = sbr.rel (%p462) target = $region16
        $region15: #{tpu_custom_call.1} parent=11 // pred_region
          %466 = vsyncadd [#allocation7], 0
          %s467 = sshll.u32 %s2, 4
          %s468 = int_to_ptr.hbm [resolvable:$true] %s467
          %s469 = sshll.u32 [#allocation6], 4
          %s470 = int_to_ptr.vmem [resolvable:$true] %s469
          %475 = dma.hbm_to_vmem [thread:$0]  %s468, 256, %s470, [#allocation7], 64, 64, 4
        $region16: #{tpu_custom_call.1} parent=11 // pred_fallthru
          _
        // Predicated region
        $region17: #{tpu_custom_call.1} parent=11 // pred_check
          %p476 = pneg %p141
        $region18: #{tpu_custom_call.1} parent=11 // pred_check_branch
          %478 = sbr.rel (%p476) target = $region20
        $region19: #{tpu_custom_call.1} parent=11 // pred_region
          _
        $region20: #{tpu_custom_call.1} parent=11 // pred_fallthru
          _
        // Predicated region
        $region21: #{tpu_custom_call.1} parent=11 // pred_check
          %p479 = pneg %p162
        $region22: #{tpu_custom_call.1} parent=11 // pred_check_branch
          %481 = sbr.rel (%p479) target = $region24
        $region23: #{tpu_custom_call.1} parent=11 // pred_region
          %483 = vsyncadd [#allocation7], 0
          %s484 = sshll.u32 %s4, 4
          %s485 = int_to_ptr.hbm [resolvable:$true] %s484
          %s486 = sshll.u32 [#allocation8], 4
          %s487 = int_to_ptr.vmem [resolvable:$true] %s486
          %492 = dma.hbm_to_vmem [thread:$0]  %s485, 256, %s487, [#allocation7], 64, 64, 4
        $region24: #{tpu_custom_call.1} parent=11 // pred_fallthru
          _
        // Predicated region
        $region25: #{tpu_custom_call.1} parent=11 // pred_check
          %p493 = pneg %p183
        $region26: #{tpu_custom_call.1} parent=11 // pred_check_branch
          %495 = sbr.rel (%p493) target = $region28
        $region27: #{tpu_custom_call.1} parent=11 // pred_region
          _
        $region28: #{tpu_custom_call.1} parent=11 // pred_fallthru
          _
        // Predicated region
        $region29: #{tpu_custom_call.1} parent=11 // pred_check
          %p496 = pneg %p204
        $region30: #{tpu_custom_call.1} parent=11 // pred_check_branch
          %498 = sbr.rel (%p496) target = $region32
        $region31: #{tpu_custom_call.1} parent=11 // pred_region
          %500 = vsyncadd [#allocation10], 0
          %s501 = sshll.u32 %s6, 4
          %s502 = int_to_ptr.hbm [resolvable:$true] %s501
          %s503 = sshll.u32 [#allocation9], 4
          %s504 = int_to_ptr.vmem [resolvable:$true] %s503
          %509 = dma.hbm_to_vmem [thread:$0]  %s502, 256, %s504, [#allocation10], 64, 64, 4
        $region32: #{tpu_custom_call.1} parent=11 // pred_fallthru
          _
        // Predicated region
        $region33: #{tpu_custom_call.1} parent=11 // pred_check
          %p510 = pneg %p225
        $region34: #{tpu_custom_call.1} parent=11 // pred_check_branch
          %512 = sbr.rel (%p510) target = $region36
        $region35: #{tpu_custom_call.1} parent=11 // pred_region
          _
        $region36: #{tpu_custom_call.1} parent=11 // pred_fallthru
          _
        // Predicated region
        $region37: #{tpu_custom_call.1} parent=11 // pred_check
          %p513 = pneg %p246
        $region38: #{tpu_custom_call.1} parent=11 // pred_check_branch
          %515 = sbr.rel (%p513) target = $region40
        $region39: #{tpu_custom_call.1} parent=11 // pred_region
          %517 = vsyncadd [#allocation10], 0
          %s518 = sshll.u32 %s8, 4
          %s519 = int_to_ptr.hbm [resolvable:$true] %s518
          %s520 = sshll.u32 [#allocation11], 4
          %s521 = int_to_ptr.vmem [resolvable:$true] %s520
          %526 = dma.hbm_to_vmem [thread:$0]  %s519, 256, %s521, [#allocation10], 64, 64, 4
        $region40: #{tpu_custom_call.1} parent=11 // pred_fallthru
          _
        // Predicated region
        $region41: #{tpu_custom_call.1} parent=11 // pred_check
          %p527 = pneg %p267
        $region42: #{tpu_custom_call.1} parent=11 // pred_check_branch
          %529 = sbr.rel (%p527) target = $region44
        $region43: #{tpu_custom_call.1} parent=11 // pred_region
          _
        $region44: #{tpu_custom_call.1} parent=11 // pred_fallthru
          _
        // Predicated region
        $region45: #{tpu_custom_call.1} parent=11 // pred_check
          %p530 = pneg %p288
        $region46: #{tpu_custom_call.1} parent=11 // pred_check_branch
          %532 = sbr.rel (%p530) target = $region48
        $region47: #{tpu_custom_call.1} parent=11 // pred_region
          _
        $region48: #{tpu_custom_call.1} parent=11 // pred_fallthru
          _
        // Predicated region
        $region49: #{tpu_custom_call.1} parent=11 // pred_check
          %p533 = pneg %p309
        $region50: #{tpu_custom_call.1} parent=11 // pred_check_branch
          %535 = sbr.rel (%p533) target = $region52
        $region51: #{tpu_custom_call.1} parent=11 // pred_region
          _
        $region52: #{tpu_custom_call.1} parent=11 // pred_fallthru
          _
        // Predicated region
        $region53: #{tpu_custom_call.1} parent=11 // pred_check
          %p536 = pneg %p330
        $region54: #{tpu_custom_call.1} parent=11 // pred_check_branch
          %538 = sbr.rel (%p536) target = $region56
        $region55: #{tpu_custom_call.1} parent=11 // pred_region
          _
        $region56: #{tpu_custom_call.1} parent=11 // pred_fallthru
          _
        // Predicated region
        $region57: #{tpu_custom_call.1} parent=11 // pred_check
          %p539 = pneg %p351
        $region58: #{tpu_custom_call.1} parent=11 // pred_check_branch
          %541 = sbr.rel (%p539) target = $region60
        $region59: #{tpu_custom_call.1} parent=11 // pred_region
          _
        $region60: #{tpu_custom_call.1} parent=11 // pred_fallthru
          _
        // Predicated region
        $region61: #{tpu_custom_call.1} parent=11 // pred_check
          %p542 = pneg %p372
        $region62: #{tpu_custom_call.1} parent=11 // pred_check_branch
          %544 = sbr.rel (%p542) target = $region64
        $region63: #{tpu_custom_call.1} parent=11 // pred_region
          _
        $region64: #{tpu_custom_call.1} parent=11 // pred_fallthru
          _
        // Predicated region
        $region65: #{tpu_custom_call.1} parent=11 // pred_check
          %p545 = pneg %p393
        $region66: #{tpu_custom_call.1} parent=11 // pred_check_branch
          %547 = sbr.rel (%p545) target = $region68
        $region67: #{tpu_custom_call.1} parent=11 // pred_region
          _
        $region68: #{tpu_custom_call.1} parent=11 // pred_fallthru
          _
      $region12: #{tpu_custom_call.1} parent=5 // pred_fallthru
        _
      %p548 = scmp.lt.s32.totalorder %s35, 4
      // Predicated region
      $region69: #{tpu_custom_call.1} parent=5 // pred_check
        %p549 = pneg %p548
      $region70: #{tpu_custom_call.1} parent=5 // pred_check_branch
        %551 = sbr.rel (%p549) target = $region72
      $region71: #{tpu_custom_call.1} parent=5 // pred_region
        // Predicated region
        $region73: #{tpu_custom_call.1} parent=71 // pred_check
          %p552 = pneg %p67
        $region74: #{tpu_custom_call.1} parent=71 // pred_check_branch
          %554 = sbr.rel (%p552) target = $region76
        $region75: #{tpu_custom_call.1} parent=71 // pred_region
          %p555 = scmp.lt.s32.totalorder %s42, 1
          %s556 = scalar_select %p555, %s42, 1
          %s557 = smul.addr %s556, 8
          %s558 = scalar_lea.vmem %s0, %s557
        $region76: #{tpu_custom_call.1} parent=71 // pred_fallthru
          _
        // Predicated region
        $region77: #{tpu_custom_call.1} parent=71 // pred_check
          %p559 = pneg %p93
        $region78: #{tpu_custom_call.1} parent=71 // pred_check_branch
          %561 = sbr.rel (%p559) target = $region80
        $region79: #{tpu_custom_call.1} parent=71 // pred_region
          %s562 = sand.u32 %s83, 1
          %s563 = scalar_lea.sflag [#allocation4], %s562
          %s564 = sand.u32 %s83, 1
          %s565 = smul.addr %s564, 4
          %s566 = scalar_lea.vmem [#allocation3], %s565
          %568 = vsyncadd %s563, 0
          %s569 = smul.addr %s42, 4
          %s570 = scalar_lea.hbm %s1, %s569
          %s572 = sshll.u32 %s570, 4
          %s573 = int_to_ptr.hbm [resolvable:$true] %s572
          %s574 = sshll.u32 %s566, 4
          %s575 = int_to_ptr.vmem [resolvable:$true] %s574
          %577 = dma.hbm_to_vmem [thread:$0]  %s573, 64, %s575, %s563
        $region80: #{tpu_custom_call.1} parent=71 // pred_fallthru
          _
      $region72: #{tpu_custom_call.1} parent=5 // pred_fallthru
        _
      %p578 = scmp.le.s32.totalorder 1, %s35
      %p579 = scmp.lt.s32.totalorder %s35, 5
      %p580 = pnand %p578, %p579
      %p581 = pneg %p580
      // Predicated region
      $region81: #{tpu_custom_call.1} parent=5 // pred_check
        _
      $region82: #{tpu_custom_call.1} parent=5 // pred_check_branch
        %583 = sbr.rel (%p580) target = $region84
      $region83: #{tpu_custom_call.1} parent=5 // pred_region
        %s584 = ssub.s32 %s35, 1
        %s585 = sand.u32 %s86, 1
        %s586 = scalar_lea.sflag [#allocation4], %s585
        %s587 = sand.u32 %s86, 1
        %s588 = smul.addr %s587, 4
        %s589 = scalar_lea.vmem [#allocation3], %s588
        // Predicated region
        $region85: #{tpu_custom_call.1} parent=83 // pred_check
          %p590 = pneg %p99
        $region86: #{tpu_custom_call.1} parent=83 // pred_check_branch
          %592 = sbr.rel (%p590) target = $region88
        $region87: #{tpu_custom_call.1} parent=83 // pred_region
          %594 = dma.done %s586, 64
        $region88: #{tpu_custom_call.1} parent=83 // pred_fallthru
          _
        // Predicated region
        $region89: #{tpu_custom_call.1} parent=83 // pred_check
          %p595 = pneg %p120
        $region90: #{tpu_custom_call.1} parent=83 // pred_check_branch
          %597 = sbr.rel (%p595) target = $region92
        $region91: #{tpu_custom_call.1} parent=83 // pred_region
          %599 = dma.done [#allocation7], 256
        $region92: #{tpu_custom_call.1} parent=83 // pred_fallthru
          _
        // Predicated region
        $region93: #{tpu_custom_call.1} parent=83 // pred_check
          %p600 = pneg %p162
        $region94: #{tpu_custom_call.1} parent=83 // pred_check_branch
          %602 = sbr.rel (%p600) target = $region96
        $region95: #{tpu_custom_call.1} parent=83 // pred_region
          %604 = dma.done [#allocation7], 256
        $region96: #{tpu_custom_call.1} parent=83 // pred_fallthru
          _
        // Predicated region
        $region97: #{tpu_custom_call.1} parent=83 // pred_check
          %p605 = pneg %p204
        $region98: #{tpu_custom_call.1} parent=83 // pred_check_branch
          %607 = sbr.rel (%p605) target = $region100
        $region99: #{tpu_custom_call.1} parent=83 // pred_region
          %609 = dma.done [#allocation10], 256
        $region100: #{tpu_custom_call.1} parent=83 // pred_fallthru
          _
        // Predicated region
        $region101: #{tpu_custom_call.1} parent=83 // pred_check
          %p610 = pneg %p246
        $region102: #{tpu_custom_call.1} parent=83 // pred_check_branch
          %612 = sbr.rel (%p610) target = $region104
        $region103: #{tpu_custom_call.1} parent=83 // pred_region
          %614 = dma.done [#allocation10], 256
        $region104: #{tpu_custom_call.1} parent=83 // pred_fallthru
          _
        %p615 = scmp.lt.s32.totalorder %s44, 1
        %s616 = scalar_select %p615, %s44, 1
        %s617 = smul.addr %s616, 8
        %s618 = scalar_lea.vmem %s0, %s617
        %p619 = pneg %p73
        %p620 = pneg %p70
        %s621 = sand.u32 %s86, 1
        %s622 = scalar_lea.sflag [#allocation4], %s621
        %s623 = sand.u32 %s86, 1
        %s624 = smul.addr %s623, 4
        %s625 = scalar_lea.vmem [#allocation3], %s624
        %p626 = pneg %p99
        %p627 = pneg %p96
        %p628 = pneg %p120
        %p629 = pneg %p117
        %p630 = pneg %p141
        %p631 = pneg %p138
        %p632 = pneg %p162
        %p633 = pneg %p159
        %p634 = pneg %p183
        %p635 = pneg %p180
        %p636 = pneg %p204
        %p637 = pneg %p201
        %p638 = pneg %p225
        %p639 = pneg %p222
        %p640 = pneg %p246
        %p641 = pneg %p243
        %p642 = pneg %p267
        %p643 = pneg %p264
        %p644 = pneg %p288
        %p645 = pneg %p285
        %p646 = pneg %p309
        %p647 = pneg %p306
        %p648 = pneg %p330
        %p649 = pneg %p327
        %p650 = pneg %p351
        %p651 = pneg %p348
        %p652 = pneg %p372
        %p653 = pneg %p369
        %p654 = pneg %p393
        %p655 = pneg %p390
        %p656 = pneg %p421
        %p657 = pneg %p418
        %s658 = sand.u32 %s408, 1
        %s659 = scalar_lea.sflag [#allocation5], %s658
        %s660 = sand.u32 %s408, 1
        %s661 = smul.addr %s660, 8
        %s662 = scalar_lea.vmem [#allocation12], %s661
        %p663 = pneg %p447
        %p664 = pneg %p444
        %s665 = sand.u32 %s434, 1
        %s666 = scalar_lea.sflag [#allocation14], %s665
        %s667 = sand.u32 %s434, 1
        %s668 = scalar_lea.vmem [#allocation13], %s667
        %p669 = scmp.lt.s32.totalorder %s44, 1
        %s670 = scalar_select %p669, %s44, 1
        %s671 = smul.addr %s670, 8
        %s672 = scalar_lea.vmem %s0, %s671
        %p674 = scmp.eq.s32.totalorder %s45, 0
        // Predicated region
        $region105: #{tpu_custom_call.1} parent=83 // pred_check
          %p675 = pneg %p674
        $region106: #{tpu_custom_call.1} parent=83 // pred_check_branch
          %677 = sbr.rel (%p675) target = $region108
        $region107: #{tpu_custom_call.1} parent=83 // pred_region
          %v678 = vld [vmem:[%s672] sm:$0xff]
          %vm679 = vcmask 261120
          %680 = vst.msk [vmem:[#allocation2] sm:$0xff] %vm679, %v678
        $region108: #{tpu_custom_call.1} parent=83 // pred_fallthru
          _
        %v681 = vld [vmem:[#allocation2] sm:$0xff]
        %v682 = vld [vmem:[%s589] sm:$0xf]
        %v683 = vld [vmem:[#allocation6] sm:$0xf]
        %v684 = vld [vmem:[#allocation6 + $0x4] sm:$0xf]
        %v685 = vld [vmem:[#allocation6 + $0x8] sm:$0xf]
        %v686 = vld [vmem:[#allocation6 + $0xc] sm:$0xf]
        %v687 = vld [vmem:[%s3] sm:$0x1]
        %v688 = vld [vmem:[#allocation8] sm:$0xf]
        %v689 = vld [vmem:[#allocation8 + $0x4] sm:$0xf]
        %v690 = vld [vmem:[#allocation8 + $0x8] sm:$0xf]
        %v691 = vld [vmem:[#allocation8 + $0xc] sm:$0xf]
        %v692 = vld [vmem:[%s5] sm:$0x1]
        %v693 = vld [vmem:[#allocation9] sm:$0xf]
        %v694 = vld [vmem:[#allocation9 + $0x4] sm:$0xf]
        %v695 = vld [vmem:[#allocation9 + $0x8] sm:$0xf]
        %v696 = vld [vmem:[#allocation9 + $0xc] sm:$0xf]
        %v697 = vld [vmem:[%s7] sm:$0x1]
        %v698 = vld [vmem:[#allocation11] sm:$0xf]
        %v699 = vld [vmem:[#allocation11 + $0x4] sm:$0xf]
        %v700 = vld [vmem:[#allocation11 + $0x8] sm:$0xf]
        %v701 = vld [vmem:[#allocation11 + $0xc] sm:$0xf]
        %v702 = vld [vmem:[%s9] sm:$0x1]
        %v703 = vld [vmem:[%s10] sm:$0x1]
        %v704 = vld [vmem:[%s11] sm:$0x1]
        %v705 = vld [vmem:[%s12] sm:$0x1]
        %v706 = vld [vmem:[%s13] sm:$0x1]
        %v707 = vpack.c.bf16 %v681, %v681
        %v709 = vperm.slane %v687, 0
        %v715 = vunpack.c.l.b16 %v683
        %v716 = vunpack.c.l.b16 %v684
        %v717 = vunpack.c.l.b16 %v685
        %v718 = vunpack.c.l.b16 %v686
        %v719 = vpack.c.b16 %v716, %v715
        %v720 = vpack.c.b16 %v718, %v717
        %vm723 = vcmask 261120
        %v725 = vsel %vm723, %v707, 0
        %727 = vmatpush.bf16.msra.mxu0 0
        %728 = vmatpush.bf16.msra.mxu0 0
        %729 = vmatpush.bf16.msra.mxu0 0
        %730 = vmatpush.bf16.msra.mxu0 0
        %731 = vmatpush.bf16.msra.mxu0 0
        %732 = vmatpush.bf16.msra.mxu0 0
        %733 = vmatpush.bf16.msra.mxu0 %v720
        %734 = vmatpush.bf16.msra.mxu0 %v719
        %735 = vmatmul.bf16.gmra.mxu0 %v725
        %v736 = vpop.f32.mrf.mxu0
        %v737 = vadd.f32 %v709, %v736
        %v738 = vpop.f32.mrf.mxu0
        %739 = vdwg.mxu0
        %v740 = vpack.c.bf16 %v737, %v737
        %v742 = vunpack.c.l.b16 %v740
        %v743 = vpack.c.b16 %v742, %v742
        %744 = vrot.lane.b32.xlu0 %v743, 96
        %v745 = vpop.permute.xlu0 %744
        %vm746 = vcmask 64512
        %v748 = vsel %vm746, %v740, 0
        %v751 = vsel %vm746, %v745, 0
        %753 = vmatpush.bf16.xpose.msra.mxu0 0
        %754 = vmatpush.bf16.xpose.msra.mxu0 0
        %755 = vmatpush.bf16.xpose.msra.mxu0 0
        %756 = vmatpush.bf16.xpose.msra.mxu0 0
        %757 = vmatpush.bf16.xpose.msra.mxu0 0
        %758 = vmatpush.bf16.xpose.msra.mxu0 0
        %759 = vmatpush.bf16.xpose.msra.mxu0 0
        %760 = vmatpush.bf16.xpose.msra.mxu0 %v751
        %761 = vmatmul.bf16.gmra.mxu0 %v748
        %v762 = vpop.f32.mrf.mxu0
        %v763 = vadd.f32 0.0, %v762
        %v764 = vpop.f32.mrf.mxu0
        %765 = vdwg.mxu0
        %v766 = vsel %vm746, %v763, -inf
        %767 = vmax.xlane.f32.xlu0 %v766
        %v768 = vpop.xlane.xlu0 %767
        %v769 = vsub.f32 %v763, %v768
        %v770 = vmul.f32 %v769, 1.442695
        %v771 = vpow.pop %v770
        %v772 = vsel %vm746, %v771, 0.0
        %773 = vadd.xlane.f32.xlu0 %v772
        %v774 = vpop.xlane.xlu0 %773
        %v775 = vrcp.pop %v774
        %v776 = vmul.f32 %v771, %v775
        %v777 = vadd.f32 %v776, 0.0
        %v778 = vpack.c.bf16 %v776, %v776
        %779 = vrot.lane.b32.xlu0 %v743, 64
        %v780 = vpop.permute.xlu0 %779
        %v782 = vsel %vm746, %v778, 0
        %vm784 = vcmask 1043456
        %v786 = vsel %vm784, %v780, 0
        %788 = vmatpush.bf16.msra.mxu0 0
        %789 = vmatpush.bf16.msra.mxu0 0
        %790 = vmatpush.bf16.msra.mxu0 0
        %791 = vmatpush.bf16.msra.mxu0 0
        %792 = vmatpush.bf16.msra.mxu0 0
        %793 = vmatpush.bf16.msra.mxu0 0
        %794 = vmatpush.bf16.msra.mxu0 0
        %795 = vmatpush.bf16.msra.mxu0 %v786
        %796 = vmatmul.bf16.gmra.mxu0 %v782
        %v797 = vpop.f32.mrf.mxu0
        %v798 = vadd.f32 0.0, %v797
        %v799 = vpop.f32.mrf.mxu0
        %800 = vdwg.mxu0
        %v801 = vpack.c.bf16 %v798, %v798
        %802 = vrot.lane.b32.xlu0 %v743, 120
        %v803 = vpop.permute.xlu0 %802
        %804 = vrot.lane.b32.xlu0 %v743, 88
        %v805 = vpop.permute.xlu0 %804
        %v807 = vsel %vm746, %v803, 0
        %v810 = vsel %vm746, %v805, 0
        %812 = vmatpush.bf16.xpose.msra.mxu0 0
        %813 = vmatpush.bf16.xpose.msra.mxu0 0
        %814 = vmatpush.bf16.xpose.msra.mxu0 0
        %815 = vmatpush.bf16.xpose.msra.mxu0 0
        %816 = vmatpush.bf16.xpose.msra.mxu0 0
        %817 = vmatpush.bf16.xpose.msra.mxu0 0
        %818 = vmatpush.bf16.xpose.msra.mxu0 0
        %819 = vmatpush.bf16.xpose.msra.mxu0 %v810
        %820 = vmatmul.bf16.gmra.mxu0 %v807
        %v821 = vpop.f32.mrf.mxu0
        %v822 = vadd.f32 0.0, %v821
        %v823 = vpop.f32.mrf.mxu0
        %824 = vdwg.mxu0
        %v825 = vsel %vm746, %v822, -inf
        %826 = vmax.xlane.f32.xlu0 %v825
        %v827 = vpop.xlane.xlu0 %826
        %v828 = vsub.f32 %v822, %v827
        %v829 = vmul.f32 %v828, 1.442695
        %v830 = vpow.pop %v829
        %v831 = vsel %vm746, %v830, 0.0
        %832 = vadd.xlane.f32.xlu0 %v831
        %v833 = vpop.xlane.xlu0 %832
        %v834 = vrcp.pop %v833
        %v835 = vmul.f32 %v830, %v834
        %v836 = vadd.f32 %v777, %v835
        %v837 = vpack.c.bf16 %v835, %v835
        %838 = vrot.lane.b32.xlu0 %v743, 56
        %v839 = vpop.permute.xlu0 %838
        %v841 = vsel %vm746, %v837, 0
        %v844 = vsel %vm784, %v839, 0
        %846 = vmatpush.bf16.msra.mxu0 0
        %847 = vmatpush.bf16.msra.mxu0 0
        %848 = vmatpush.bf16.msra.mxu0 0
        %849 = vmatpush.bf16.msra.mxu0 0
        %850 = vmatpush.bf16.msra.mxu0 0
        %851 = vmatpush.bf16.msra.mxu0 0
        %852 = vmatpush.bf16.msra.mxu0 0
        %853 = vmatpush.bf16.msra.mxu0 %v844
        %854 = vmatmul.bf16.gmra.mxu0 %v841
        %v855 = vpop.f32.mrf.mxu0
        %v856 = vadd.f32 0.0, %v855
        %v857 = vpop.f32.mrf.mxu0
        %858 = vdwg.mxu0
        %v859 = vpack.c.bf16 %v856, %v856
        %v861 = vsel %vm746, %v859, 0
        %v864 = vsel %vm784, %v689, 0
        %866 = vmatpush.bf16.msra.mxu0 0
        %867 = vmatpush.bf16.msra.mxu0 0
        %868 = vmatpush.bf16.msra.mxu0 0
        %869 = vmatpush.bf16.msra.mxu0 0
        %870 = vmatpush.bf16.msra.mxu0 0
        %871 = vmatpush.bf16.msra.mxu0 0
        %872 = vmatpush.bf16.msra.mxu0 0
        %873 = vmatpush.bf16.msra.mxu0 %v864
        %874 = vmatmul.bf16.gmra.mxu0 %v861
        %v875 = vpop.f32.mrf.mxu0
        %v876 = vadd.f32 0.0, %v875
        %v877 = vpop.f32.mrf.mxu0
        %878 = vdwg.mxu0
        %v880 = vsel %vm746, %v801, 0
        %v883 = vsel %vm784, %v688, 0
        %885 = vmatpush.bf16.msra.mxu0 0
        %886 = vmatpush.bf16.msra.mxu0 0
        %887 = vmatpush.bf16.msra.mxu0 0
        %888 = vmatpush.bf16.msra.mxu0 0
        %889 = vmatpush.bf16.msra.mxu0 0
        %890 = vmatpush.bf16.msra.mxu0 0
        %891 = vmatpush.bf16.msra.mxu0 0
        %892 = vmatpush.bf16.msra.mxu0 %v883
        %893 = vmatmul.bf16.gmra.mxu0 %v880
        %v894 = vpop.f32.mrf.mxu0
        %v895 = vadd.f32 %v876, %v894
        %v896 = vpop.f32.mrf.mxu0
        %897 = vdwg.mxu0
        %898 = vrot.lane.b32.xlu0 %v743, 112
        %v899 = vpop.permute.xlu0 %898
        %900 = vrot.lane.b32.xlu0 %v743, 80
        %v901 = vpop.permute.xlu0 %900
        %v903 = vsel %vm746, %v899, 0
        %v906 = vsel %vm746, %v901, 0
        %908 = vmatpush.bf16.xpose.msra.mxu0 0
        %909 = vmatpush.bf16.xpose.msra.mxu0 0
        %910 = vmatpush.bf16.xpose.msra.mxu0 0
        %911 = vmatpush.bf16.xpose.msra.mxu0 0
        %912 = vmatpush.bf16.xpose.msra.mxu0 0
        %913 = vmatpush.bf16.xpose.msra.mxu0 0
        %914 = vmatpush.bf16.xpose.msra.mxu0 0
        %915 = vmatpush.bf16.xpose.msra.mxu0 %v906
        %916 = vmatmul.bf16.gmra.mxu0 %v903
        %v917 = vpop.f32.mrf.mxu0
        %v918 = vadd.f32 0.0, %v917
        %v919 = vpop.f32.mrf.mxu0
        %920 = vdwg.mxu0
        %v921 = vsel %vm746, %v918, -inf
        %922 = vmax.xlane.f32.xlu0 %v921
        %v923 = vpop.xlane.xlu0 %922
        %v924 = vsub.f32 %v918, %v923
        %v925 = vmul.f32 %v924, 1.442695
        %v926 = vpow.pop %v925
        %v927 = vsel %vm746, %v926, 0.0
        %928 = vadd.xlane.f32.xlu0 %v927
        %v929 = vpop.xlane.xlu0 %928
        %v930 = vrcp.pop %v929
        %v931 = vmul.f32 %v926, %v930
        %v932 = vadd.f32 %v836, %v931
        %v933 = vpack.c.bf16 %v931, %v931
        %934 = vrot.lane.b32.xlu0 %v743, 48
        %v935 = vpop.permute.xlu0 %934
        %v937 = vsel %vm746, %v933, 0
        %v940 = vsel %vm784, %v935, 0
        %942 = vmatpush.bf16.msra.mxu0 0
        %943 = vmatpush.bf16.msra.mxu0 0
        %944 = vmatpush.bf16.msra.mxu0 0
        %945 = vmatpush.bf16.msra.mxu0 0
        %946 = vmatpush.bf16.msra.mxu0 0
        %947 = vmatpush.bf16.msra.mxu0 0
        %948 = vmatpush.bf16.msra.mxu0 0
        %949 = vmatpush.bf16.msra.mxu0 %v940
        %950 = vmatmul.bf16.gmra.mxu0 %v937
        %v951 = vpop.f32.mrf.mxu0
        %v952 = vadd.f32 0.0, %v951
        %v953 = vpop.f32.mrf.mxu0
        %954 = vdwg.mxu0
        %v955 = vpack.c.bf16 %v952, %v952
        %v957 = vsel %vm746, %v955, 0
        %v960 = vsel %vm784, %v690, 0
        %962 = vmatpush.bf16.msra.mxu0 0
        %963 = vmatpush.bf16.msra.mxu0 0
        %964 = vmatpush.bf16.msra.mxu0 0
        %965 = vmatpush.bf16.msra.mxu0 0
        %966 = vmatpush.bf16.msra.mxu0 0
        %967 = vmatpush.bf16.msra.mxu0 0
        %968 = vmatpush.bf16.msra.mxu0 0
        %969 = vmatpush.bf16.msra.mxu0 %v960
        %970 = vmatmul.bf16.gmra.mxu0 %v957
        %v971 = vpop.f32.mrf.mxu0
        %v972 = vadd.f32 0.0, %v971
        %v973 = vpop.f32.mrf.mxu0
        %974 = vdwg.mxu0
        %v975 = vadd.f32 %v895, %v972
        %976 = vrot.lane.b32.xlu0 %v743, 104
        %v977 = vpop.permute.xlu0 %976
        %978 = vrot.lane.b32.xlu0 %v743, 72
        %v979 = vpop.permute.xlu0 %978
        %v981 = vsel %vm746, %v977, 0
        %v984 = vsel %vm746, %v979, 0
        %986 = vmatpush.bf16.xpose.msra.mxu0 0
        %987 = vmatpush.bf16.xpose.msra.mxu0 0
        %988 = vmatpush.bf16.xpose.msra.mxu0 0
        %989 = vmatpush.bf16.xpose.msra.mxu0 0
        %990 = vmatpush.bf16.xpose.msra.mxu0 0
        %991 = vmatpush.bf16.xpose.msra.mxu0 0
        %992 = vmatpush.bf16.xpose.msra.mxu0 0
        %993 = vmatpush.bf16.xpose.msra.mxu0 %v984
        %994 = vmatmul.bf16.gmra.mxu0 %v981
        %v995 = vpop.f32.mrf.mxu0
        %v996 = vadd.f32 0.0, %v995
        %v997 = vpop.f32.mrf.mxu0
        %998 = vdwg.mxu0
        %v999 = vsel %vm746, %v996, -inf
        %1000 = vmax.xlane.f32.xlu0 %v999
        %v1001 = vpop.xlane.xlu0 %1000
        %v1002 = vsub.f32 %v996, %v1001
        %v1003 = vmul.f32 %v1002, 1.442695
        %v1004 = vpow.pop %v1003
        %v1005 = vsel %vm746, %v1004, 0.0
        %1006 = vadd.xlane.f32.xlu0 %v1005
        %v1007 = vpop.xlane.xlu0 %1006
        %v1008 = vrcp.pop %v1007
        %v1009 = vmul.f32 %v1004, %v1008
        %v1010 = vadd.f32 %v932, %v1009
        %v1011 = vpack.c.bf16 %v1009, %v1009
        %1012 = vrot.lane.b32.xlu0 %v743, 40
        %v1013 = vpop.permute.xlu0 %1012
        %v1015 = vsel %vm746, %v1011, 0
        %v1018 = vsel %vm784, %v1013, 0
        %1020 = vmatpush.bf16.msra.mxu0 0
        %1021 = vmatpush.bf16.msra.mxu0 0
        %1022 = vmatpush.bf16.msra.mxu0 0
        %1023 = vmatpush.bf16.msra.mxu0 0
        %1024 = vmatpush.bf16.msra.mxu0 0
        %1025 = vmatpush.bf16.msra.mxu0 0
        %1026 = vmatpush.bf16.msra.mxu0 0
        %1027 = vmatpush.bf16.msra.mxu0 %v1018
        %1028 = vmatmul.bf16.gmra.mxu0 %v1015
        %v1029 = vpop.f32.mrf.mxu0
        %v1030 = vadd.f32 0.0, %v1029
        %v1031 = vpop.f32.mrf.mxu0
        %1032 = vdwg.mxu0
        %v1033 = vpack.c.bf16 %v1030, %v1030
        %v1035 = vsel %vm746, %v1033, 0
        %v1038 = vsel %vm784, %v691, 0
        %1040 = vmatpush.bf16.msra.mxu0 0
        %1041 = vmatpush.bf16.msra.mxu0 0
        %1042 = vmatpush.bf16.msra.mxu0 0
        %1043 = vmatpush.bf16.msra.mxu0 0
        %1044 = vmatpush.bf16.msra.mxu0 0
        %1045 = vmatpush.bf16.msra.mxu0 0
        %1046 = vmatpush.bf16.msra.mxu0 0
        %1047 = vmatpush.bf16.msra.mxu0 %v1038
        %1048 = vmatmul.bf16.gmra.mxu0 %v1035
        %v1049 = vpop.f32.mrf.mxu0
        %v1050 = vadd.f32 0.0, %v1049
        %v1051 = vpop.f32.mrf.mxu0
        %1052 = vdwg.mxu0
        %v1053 = vadd.f32 %v975, %v1050
        %v1054 = vmul.f32 %v1010, 0.25
        %v1056 = vperm.slane %v692, 0
        %v1058 = vadd.f32 %v1053, %v1056
        %v1059 = vpack.c.bf16 %v1058, %v1058
        %v1061 = vsel %vm746, %v682, 0
        %v1064 = vsel %vm784, %v1059, 0
        %1066 = vmatpush.bf16.msra.mxu0 0
        %1067 = vmatpush.bf16.msra.mxu0 0
        %1068 = vmatpush.bf16.msra.mxu0 0
        %1069 = vmatpush.bf16.msra.mxu0 0
        %1070 = vmatpush.bf16.msra.mxu0 0
        %1071 = vmatpush.bf16.msra.mxu0 0
        %1072 = vmatpush.bf16.msra.mxu0 0
        %1073 = vmatpush.bf16.msra.mxu0 %v1064
        %1074 = vmatmul.bf16.gmra.mxu0 %v1061
        %v1075 = vpop.f32.mrf.mxu0
        %v1076 = vadd.f32 0.0, %v1075
        %v1077 = vpop.f32.mrf.mxu0
        %1078 = vdwg.mxu0
        %v1079 = vadd.f32 %v681, %v1076
        %v1080 = vsel %vm723, %v1079, 0.0
        %1081 = vadd.xlane.f32.xlu0 %v1080
        %v1082 = vpop.xlane.xlu0 %1081
        %v1083 = vrcp.pop 32.0
        %v1084 = vmul.f32 32.0, %v1083
        %v1085 = vsub.f32 1.0, %v1084
        %v1086 = vmul.f32 %v1083, %v1085
        %v1087 = vadd.f32 %v1083, %v1086
        %vm1088 = vweird.f32 %v1083
        %v1089 = vsel %vm1088, %v1083, %v1087
        %v1090 = vmul.f32 %v1082, %v1089
        %v1091 = vsub.f32 %v1079, %v1090
        %v1092 = vmul.f32 %v1091, %v1091
        %v1093 = vsel %vm723, %v1092, 0.0
        %1094 = vadd.xlane.f32.xlu0 %v1093
        %v1095 = vpop.xlane.xlu0 %1094
        %v1096 = vmul.f32 %v1095, %v1089
        %v1097 = vadd.f32 %v1096, 1e-05
        %v1098 = vrsqrt.pop %v1097
        %v1099 = vmul.f32 %v1098, %v1097
        %v1100 = vmul.f32 %v1099, %v1098
        %v1101 = vmul.f32 0.5, %v1100
        %v1102 = vsub.f32 1.5, %v1101
        %v1103 = vmul.f32 %v1098, %v1102
        %vm1104 = vweird.f32 %v1097
        %vm1105 = vweird.f32 %v1098
        %vm1106 = vmor %vm1104, %vm1105
        %v1107 = vsel %vm1106, %v1098, %v1103
        %v1108 = vmul.f32 %v1091, %v1107
        %v1110 = vperm.slane %v703, 0
        %v1112 = vmul.f32 %v1108, %v1110
        %v1114 = vperm.slane %v704, 0
        %v1116 = vadd.f32 %v1112, %v1114
        %v1117 = vpack.c.bf16 %v1116, %v1116
        %v1119 = vperm.slane %v697, 0
        %v1125 = vunpack.c.l.b16 %v693
        %v1126 = vunpack.c.l.b16 %v694
        %v1127 = vunpack.c.l.b16 %v695
        %v1128 = vunpack.c.l.b16 %v696
        %v1129 = vpack.c.b16 %v1126, %v1125
        %v1130 = vpack.c.b16 %v1128, %v1127
        %v1134 = vsel %vm723, %v1117, 0
        %1136 = vmatpush.bf16.msra.mxu0 0
        %1137 = vmatpush.bf16.msra.mxu0 0
        %1138 = vmatpush.bf16.msra.mxu0 0
        %1139 = vmatpush.bf16.msra.mxu0 0
        %1140 = vmatpush.bf16.msra.mxu0 0
        %1141 = vmatpush.bf16.msra.mxu0 0
        %1142 = vmatpush.bf16.msra.mxu0 %v1130
        %1143 = vmatpush.bf16.msra.mxu0 %v1129
        %1144 = vmatmul.bf16.gmra.mxu0 %v1134
        %v1145 = vpop.f32.mrf.mxu0
        %v1146 = vadd.f32 %v1119, %v1145
        %v1147 = vpop.f32.mrf.mxu0
        %1148 = vdwg.mxu0
        %v1149 = vmul.f32 %v1146, 0.5
        %v1150 = vmul.f32 %v1146, 0.70710677
        %v1151 = vmul.f32 %v1150, %v1150
        %v1152 = vmin.f32 16.0, %v1151
        %v1153 = vmul.f32 %v1152, 2.1237322e-06
        %v1154 = vadd.f32 %v1153, 0.00028619796
        %v1155 = vmul.f32 %v1152, %v1154
        %v1156 = vadd.f32 %v1155, 0.0036580483
        %v1157 = vmul.f32 %v1152, %v1156
        %v1158 = vadd.f32 %v1157, 0.05243302
        %v1159 = vmul.f32 %v1152, %v1158
        %v1160 = vadd.f32 %v1159, 0.18741608
        %v1161 = vmul.f32 %v1152, %v1160
        %v1162 = vadd.f32 %v1161, 1.1283791
        %v1163 = vmul.f32 %v1150, %v1162
        %v1164 = vmul.f32 %v1152, 3.8918573e-05
        %v1165 = vadd.f32 %v1164, 0.001143296
        %v1166 = vmul.f32 %v1152, %v1165
        %v1167 = vadd.f32 %v1166, 0.014752088
        %v1168 = vmul.f32 %v1152, %v1167
        %v1169 = vadd.f32 %v1168, 0.112945676
        %v1170 = vmul.f32 %v1152, %v1169
        %v1171 = vadd.f32 %v1170, 0.4994258
        %v1172 = vmul.f32 %v1152, %v1171
        %v1173 = vadd.f32 %v1172, 1.0
        %v1174 = vrcp.pop %v1173
        %v1175 = vmul.f32 %v1173, %v1174
        %v1176 = vsub.f32 1.0, %v1175
        %v1177 = vmul.f32 %v1174, %v1176
        %v1178 = vadd.f32 %v1174, %v1177
        %vm1179 = vweird.f32 %v1173
        %vm1180 = vweird.f32 %v1174
        %vm1181 = vmor %vm1179, %vm1180
        %v1182 = vsel %vm1181, %v1174, %v1178
        %v1183 = vand.u32 2147483647, %v1173
        %vm1184 = vcmp.eq.f32.partialorder %v1183, 8.507059e+37
        %v1185 = vand.u32 %v1173, 2147483648
        %v1186 = vor.u32 1.1754944e-38, %v1185
        %v1187 = vsel %vm1184, %v1186, %v1182
        %v1188 = vmul.f32 %v1163, %v1187
        %v1189 = vmin.f32 %v1188, 1.0
        %v1190 = vmax.f32 %v1189, -1.0
        %v1191 = vadd.f32 %v1190, 1.0
        %v1192 = vmul.f32 %v1149, %v1191
        %v1193 = vpack.c.bf16 %v1192, %v1192
        %v1195 = vperm.slane %v702, 0
        %v1201 = vunpack.c.l.b16 %v698
        %v1202 = vunpack.c.l.b16 %v699
        %v1203 = vunpack.c.l.b16 %v700
        %v1204 = vunpack.c.l.b16 %v701
        %v1205 = vpack.c.b16 %v1202, %v1201
        %v1206 = vpack.c.b16 %v1204, %v1203
        %v1210 = vsel %vm723, %v1193, 0
        %1212 = vmatpush.bf16.msra.mxu0 0
        %1213 = vmatpush.bf16.msra.mxu0 0
        %1214 = vmatpush.bf16.msra.mxu0 0
        %1215 = vmatpush.bf16.msra.mxu0 0
        %1216 = vmatpush.bf16.msra.mxu0 0
        %1217 = vmatpush.bf16.msra.mxu0 0
        %1218 = vmatpush.bf16.msra.mxu0 %v1206
        %1219 = vmatpush.bf16.msra.mxu0 %v1205
        %1220 = vmatmul.bf16.gmra.mxu0 %v1210
        %v1221 = vpop.f32.mrf.mxu0
        %v1222 = vadd.f32 %v1195, %v1221
        %v1223 = vpop.f32.mrf.mxu0
        %1224 = vdwg.mxu0
        %v1225 = vadd.f32 %v1116, %v1222
        %v1226 = vsel %vm723, %v1225, 0.0
        %1227 = vadd.xlane.f32.xlu0 %v1226
        %v1228 = vpop.xlane.xlu0 %1227
        %v1229 = vmul.f32 %v1228, %v1089
        %v1230 = vsub.f32 %v1225, %v1229
        %v1231 = vmul.f32 %v1230, %v1230
        %v1232 = vsel %vm723, %v1231, 0.0
        %1233 = vadd.xlane.f32.xlu0 %v1232
        %v1234 = vpop.xlane.xlu0 %1233
        %v1235 = vmul.f32 %v1234, %v1089
        %v1236 = vadd.f32 %v1235, 1e-05
        %v1237 = vrsqrt.pop %v1236
        %v1238 = vmul.f32 %v1237, %v1236
        %v1239 = vmul.f32 %v1238, %v1237
        %v1240 = vmul.f32 0.5, %v1239
        %v1241 = vsub.f32 1.5, %v1240
        %v1242 = vmul.f32 %v1237, %v1241
        %vm1243 = vweird.f32 %v1236
        %vm1244 = vweird.f32 %v1237
        %vm1245 = vmor %vm1243, %vm1244
        %v1246 = vsel %vm1245, %v1237, %v1242
        %v1247 = vmul.f32 %v1230, %v1246
        %v1249 = vperm.slane %v705, 0
        %v1251 = vmul.f32 %v1247, %v1249
        %v1253 = vperm.slane %v706, 0
        %v1255 = vadd.f32 %v1251, %v1253
        %1256 = vst.msk [vmem:[#allocation2] sm:$0xff] %vm723, %v1255
        %1257 = vst.msk [vmem:[%s662] sm:$0xff] %vm746, %v1054
        %p1258 = scmp.eq.s32.totalorder %s45, 1
        // Predicated region
        $region109: #{tpu_custom_call.1} parent=83 // pred_check
          %p1259 = pneg %p1258
        $region110: #{tpu_custom_call.1} parent=83 // pred_check_branch
          %1261 = sbr.rel (%p1259) target = $region112
        $region111: #{tpu_custom_call.1} parent=83 // pred_region
          %v1262 = vsel %vm723, %v1255, 0.0
          %v1263 = vrot.slane %v1262, 4
          %v1264 = vadd.f32 %v1262, %v1263
          %v1265 = vrot.slane %v1264, 2
          %v1266 = vadd.f32 %v1264, %v1265
          %v1267 = vrot.slane %v1266, 1
          %v1268 = vadd.f32 %v1266, %v1267
          %v1269 = vrcp.pop 8.0
          %v1270 = vmul.f32 8.0, %v1269
          %v1271 = vsub.f32 1.0, %v1270
          %v1272 = vmul.f32 %v1269, %v1271
          %v1273 = vadd.f32 %v1269, %v1272
          %vm1274 = vweird.f32 %v1269
          %v1275 = vsel %vm1274, %v1269, %v1273
          %v1276 = vmul.f32 %v1268, %v1275
          %v1277 = vpack.c.bf16 %v1276, %v1276
          %v1278 = vld [vmem:[%s14] sm:$0xf]
          %v1279 = vld [vmem:[%s14 + $0x4] sm:$0xf]
          %v1280 = vld [vmem:[%s14 + $0x8] sm:$0xf]
          %v1281 = vld [vmem:[%s14 + $0xc] sm:$0xf]
          %v1282 = vld [vmem:[%s15] sm:$0x1]
          %v1287 = vunpack.c.l.b16 %v1278
          %v1288 = vunpack.c.l.b16 %v1279
          %v1289 = vunpack.c.l.b16 %v1280
          %v1290 = vunpack.c.l.b16 %v1281
          %v1291 = vpack.c.b16 %v1288, %v1287
          %v1292 = vpack.c.b16 %v1290, %v1289
          %v1296 = vsel %vm723, %v1277, 0
          %1298 = vmatpush.bf16.msra.mxu0 0
          %1299 = vmatpush.bf16.msra.mxu0 0
          %1300 = vmatpush.bf16.msra.mxu0 0
          %1301 = vmatpush.bf16.msra.mxu0 0
          %1302 = vmatpush.bf16.msra.mxu0 0
          %1303 = vmatpush.bf16.msra.mxu0 0
          %1304 = vmatpush.bf16.msra.mxu0 %v1292
          %1305 = vmatpush.bf16.msra.mxu0 %v1291
          %1306 = vmatmul.bf16.gmra.mxu0 %v1296
          %v1307 = vpop.f32.mrf.mxu0
          %v1308 = vadd.f32 %v1282, %v1307
          %v1309 = vpop.f32.mrf.mxu0
          %1310 = vdwg.mxu0
          %vm1311 = vcmask 57344
          %1312 = vst.msk [vmem:[%s668] sm:$0x1] %vm1311, %v1308
        $region112: #{tpu_custom_call.1} parent=83 // pred_fallthru
          _
        %s1313 = sand.u32 %s408, 1
        %s1314 = scalar_lea.sflag [#allocation5], %s1313
        %s1315 = sand.u32 %s408, 1
        %s1316 = smul.addr %s1315, 8
        %s1317 = scalar_lea.vmem [#allocation12], %s1316
        %s1318 = sand.u32 %s434, 1
        %s1319 = scalar_lea.sflag [#allocation14], %s1318
        %s1320 = sand.u32 %s434, 1
        %s1321 = scalar_lea.vmem [#allocation13], %s1320
        // Predicated region
        $region113: #{tpu_custom_call.1} parent=83 // pred_check
          %p1322 = pneg %p418
        $region114: #{tpu_custom_call.1} parent=83 // pred_check_branch
          %1324 = sbr.rel (%p1322) target = $region116
        $region115: #{tpu_custom_call.1} parent=83 // pred_region
          %1326 = vsyncadd %s1314, 0
          %s1327 = smul.addr %s45, 2
          %s1328 = sadd.s32 %s44, %s1327
          %s1329 = smul.addr %s1328, 8
          %s1330 = scalar_lea.hbm %s16, %s1329
          %s1332 = sshll.u32 %s1317, 4
          %s1333 = int_to_ptr.vmem [resolvable:$true] %s1332
          %s1334 = sshll.u32 %s1330, 4
          %s1335 = int_to_ptr.hbm [resolvable:$true] %s1334
          %1337 = dma.vmem_to_hbm [thread:$0]  %s1333, 128, %s1335, %s1314
        $region116: #{tpu_custom_call.1} parent=83 // pred_fallthru
          _
        // Predicated region
        $region117: #{tpu_custom_call.1} parent=83 // pred_check
          %p1338 = pneg %p444
        $region118: #{tpu_custom_call.1} parent=83 // pred_check_branch
          %1340 = sbr.rel (%p1338) target = $region120
        $region119: #{tpu_custom_call.1} parent=83 // pred_region
          %1342 = vsyncadd %s1319, 0
          %s1343 = scalar_lea.hbm %s17, %s44
          %s1345 = sshll.u32 %s1321, 4
          %s1346 = int_to_ptr.vmem [resolvable:$true] %s1345
          %s1347 = sshll.u32 %s1343, 4
          %s1348 = int_to_ptr.hbm [resolvable:$true] %s1347
          %1350 = dma.vmem_to_hbm [thread:$0]  %s1346, 16, %s1348, %s1319
        $region120: #{tpu_custom_call.1} parent=83 // pred_fallthru
          _
      $region84: #{tpu_custom_call.1} parent=5 // pred_fallthru
        _
      %p1351 = scmp.le.s32.totalorder 2, %s35
      // Predicated region
      $region121: #{tpu_custom_call.1} parent=5 // pred_check
        %p1352 = pneg %p1351
      $region122: #{tpu_custom_call.1} parent=5 // pred_check_branch
        %1354 = sbr.rel (%p1352) target = $region124
      $region123: #{tpu_custom_call.1} parent=5 // pred_region
        %s1355 = ssub.s32 %s35, 2
        // Predicated region
        $region125: #{tpu_custom_call.1} parent=123 // pred_check
          %p1356 = pneg %p424
        $region126: #{tpu_custom_call.1} parent=123 // pred_check_branch
          %1358 = sbr.rel (%p1356) target = $region128
        $region127: #{tpu_custom_call.1} parent=123 // pred_region
          %s1359 = sand.u32 %s409, 1
          %s1360 = scalar_lea.sflag [#allocation5], %s1359
          %s1361 = sand.u32 %s409, 1
          %s1362 = smul.addr %s1361, 8
          %s1363 = scalar_lea.vmem [#allocation12], %s1362
          %1365 = dma.done %s1360, 128
        $region128: #{tpu_custom_call.1} parent=123 // pred_fallthru
          _
        // Predicated region
        $region129: #{tpu_custom_call.1} parent=123 // pred_check
          %p1366 = pneg %p450
        $region130: #{tpu_custom_call.1} parent=123 // pred_check_branch
          %1368 = sbr.rel (%p1366) target = $region132
        $region131: #{tpu_custom_call.1} parent=123 // pred_region
          %s1369 = sand.u32 %s435, 1
          %s1370 = scalar_lea.sflag [#allocation14], %s1369
          %s1371 = sand.u32 %s435, 1
          %s1372 = scalar_lea.vmem [#allocation13], %s1371
          %1374 = dma.done %s1370, 16
        $region132: #{tpu_custom_call.1} parent=123 // pred_fallthru
          _
      $region124: #{tpu_custom_call.1} parent=5 // pred_fallthru
        _
    $region6: #{tpu_custom_call.1} parent=1 // loop_footer
      %s39 = sadd.s32 1, %s35
    $region7: #{tpu_custom_call.1} parent=1 // loop_footer_branch
      %34 = sbr.rel target = $region3
    $region8: #{tpu_custom_call.1} parent=1 // loop_exit
      _
    %1375 = vsyncpa [#allocation4], 1
    %s1376 = scalar_lea.sflag [#allocation4], 1
    %1377 = vsyncpa %s1376, 1
    %1378 = vsyncpa [#allocation7], 1
    %1379 = vsyncpa [#allocation10], 1
    %1380 = vsyncpa [#allocation5], 1
    %s1381 = scalar_lea.sflag [#allocation5], 1
    %1382 = vsyncpa %s1381, 1
    %1383 = vsyncpa [#allocation14], 1
    %s1384 = scalar_lea.sflag [#allocation14], 1
    %1385 = vsyncpa %s1384, 1

</llo_original>
